<compile_context>
chip_gen: v7x
topology: tpu7x:2x2x1
jax: 0.10.0
libtpu: 0.0.40
codegen_flags: <defaults>
</compile_context>

<pallas_src>
import functools

import jax
import jax.numpy as jnp
from jax.experimental import pallas as pl
from jax.experimental.pallas import tpu as pltpu

BN_EPS = 1e-3


# ----------------------------- Pallas kernel ---------------------------------

def double_conv_kernel(x_ref,
                       wqk1_ref, bqk1_ref, wv1_ref, bv1_ref, wpsi1_ref,
                       wqk2_ref, bqk2_ref, wv2_ref, bv2_ref, wpsi2_ref,
                       expand_ref, bpsi_ref,
                       out_ref,
                       pad1_ref, pad2_ref,
                       *, h, w, cin, cout, sub):
    """Both Attention blocks, fused, on one image (lane-folded layout).

    x_ref       : (H, W*Cin)            f32  input image, interior lane order
    wqk*_ref    : (W*C, 2*W*sub)        bf16 fused q|k block-diagonal weights
    bqk*_ref    : (1, 2*W*sub)          f32  per-lane bias rows
    wv*_ref     : (3, (W+2)*C, W*Cout)  bf16 3x3 conv banded weights (per ky)
    bv*_ref     : (1, W*Cout)           f32
    wpsi*_ref   : (W*sub, W)            bf16 psi 1x1 conv as grouped lane reduce
    expand_ref  : (W, W*Cout)           bf16 0/1 per-pixel -> per-lane-group expand
    bpsi_ref    : (2,)                  f32  psi biases (SMEM)
    out_ref     : (H, W*Cout)           f32  lane-dense output (W*Cout = 128 here)
    pad*_ref    : (H+2, (W+2)*C)        f32  zero-haloed activation scratch
    """
    expand = expand_ref[...]

    def attention(pad_ref, c, wqk_ref, bqk_ref, wv_ref, bv_ref, wpsi_ref, bpsi):
        xpad = pad_ref[...]                                    # (h+2, (w+2)*c) f32
        # Three row-shifted slabs (cast to bf16 for the MXU).
        x_top = xpad[0:h, :].astype(jnp.bfloat16)
        x_mid = xpad[1:h + 1, :].astype(jnp.bfloat16)
        x_bot = xpad[2:h + 2, :].astype(jnp.bfloat16)
        xint = x_mid[:, 0:w * c]                               # interior lanes

        # q | k : fused 1x1 convs as one block-diagonal matmul.
        qk = jnp.dot(xint, wqk_ref[...], preferred_element_type=jnp.float32)
        qk = jnp.maximum(qk + bqk_ref[...], 0.0)               # (h, 2*w*sub)
        q = qk[:, :w * sub]
        k = qk[:, w * sub:]

        # v : 3x3 conv as three banded matmuls (one per kernel row ky).
        v = jnp.dot(x_top, wv_ref[0], preferred_element_type=jnp.float32)
        v = v + jnp.dot(x_mid, wv_ref[1], preferred_element_type=jnp.float32)
        v = v + jnp.dot(x_bot, wv_ref[2], preferred_element_type=jnp.float32)
        v = jnp.maximum(v + bv_ref[...], 0.0)                  # (h, w*cout)

        # psi : per-pixel 1x1 conv (grouped lane reduce as a small matmul),
        # ReLU, exact sigmoid, then a 0/1 matmul expands it back to cout lanes.
        # (ReLU(q*k) is a no-op since q, k >= 0 after their own ReLUs.)
        a = (q * k).astype(jnp.bfloat16)                       # (h, w*sub)
        p = jnp.dot(a, wpsi_ref[...], preferred_element_type=jnp.float32)
        p = jnp.maximum(p + bpsi, 0.0)                         # (h, w)
        psi = 1.0 / (1.0 + jnp.exp(-p))                        # exact sigmoid
        psi = jnp.dot(psi.astype(jnp.bfloat16), expand,
                      preferred_element_type=jnp.float32)      # (h, w*cout)
        return psi * v

    # ---- Attention block 1: zero halo, copy the image into the scratch ----
    pad1_ref[...] = jnp.zeros_like(pad1_ref)
    pad1_ref[1:h + 1, 0:w * cin] = x_ref[...]
    y1 = attention(pad1_ref, cin, wqk1_ref, bqk1_ref, wv1_ref, bv1_ref,
                   wpsi1_ref, bpsi_ref[0])

    # ---- Attention block 2: intermediate stays in VMEM (no HBM round-trip) ----
    pad2_ref[...] = jnp.zeros_like(pad2_ref)
    pad2_ref[1:h + 1, 0:w * cout] = y1
    y2 = attention(pad2_ref, cout, wqk2_ref, bqk2_ref, wv2_ref, bv2_ref,
                   wpsi2_ref, bpsi_ref[1])

    out_ref[...] = y2                                          # lane-dense store


# ------------------------------ JAX glue --------------------------------------

def _fold_attention_params(p, w, cin, cout):
    """BN-folded, torch-layout params -> lane-folded banded matmul operands."""
    sub = cout // 4
    wq, bq = p["q"]
    wk, bk = p["k"]
    wv, bv = p["v"]
    wpsi, bpsi = p["psi"]
    eye_w = jnp.eye(w, dtype=jnp.float32)

    # q|k: block-diagonal (w*cin, 2*w*sub); columns = [all q lanes | all k lanes].
    wqk = jnp.concatenate([jnp.kron(eye_w, wq[:, :, 0, 0].T),
                           jnp.kron(eye_w, wk[:, :, 0, 0].T)], axis=1)
    bqk = jnp.concatenate([jnp.tile(bq, w), jnp.tile(bk, w)])[None, :]

    # v: per-ky block-banded ((w+2)*cin, w*cout), rows permuted to the scratch
    # lane order [interior x=0..w-1 | left-halo col | right-halo col] so that
    # the kernel's interior writes/reads start at lane 0.
    bands = []
    for ky in range(3):
        m = jnp.zeros(((w + 2) * cin, w * cout), jnp.float32)
        for kx in range(3):
            shift = jnp.eye(w + 2, w, k=-kx, dtype=jnp.float32)   # P[x+kx, x] = 1
            m = m + jnp.kron(shift, wv[:, :, ky, kx].T)
        bands.append(m)
    wv_band = jnp.stack(bands)                                    # natural column order
    perm = (list(range(cin, (w + 1) * cin))                       # interior columns
            + list(range(cin))                                    # left halo column
            + list(range((w + 1) * cin, (w + 2) * cin)))          # right halo column
    wv_band = wv_band[:, jnp.asarray(perm), :]
    bv_row = jnp.tile(bv, w)[None, :]

    # psi: grouped per-pixel reduction over the `sub` lanes, (w*sub, w).
    wpsi_band = jnp.kron(eye_w, wpsi[0, :, 0, 0][:, None])

    return (wqk.astype(jnp.bfloat16), bqk.astype(jnp.float32),
            wv_band.astype(jnp.bfloat16), bv_row.astype(jnp.float32),
            wpsi_band.astype(jnp.bfloat16), bpsi[0].astype(jnp.float32))


def double_conv_forward(x_nchw, params):
    n, cin, h, w = x_nchw.shape
    p1, p2 = params
    cout = p1["v"][0].shape[0]
    assert cout % 4 == 0
    sub = cout // 4

    # Single entry transpose; channels folded into lanes. No pad, no gather,
    # no HBM intermediate: both Attention blocks run inside one pallas_call.
    x2d = jnp.transpose(x_nchw, (0, 2, 3, 1)).reshape(n, h, w * cin)

    wqk1, bqk1, wv1, bv1, wpsi1, pb1 = _fold_attention_params(p1, w, cin, cout)
    wqk2, bqk2, wv2, bv2, wpsi2, pb2 = _fold_attention_params(p2, w, cout, cout)
    expand = jnp.kron(jnp.eye(w, dtype=jnp.float32),
                      jnp.ones((1, cout), jnp.float32)).astype(jnp.bfloat16)
    bpsi = jnp.stack([pb1, pb2]).astype(jnp.float32)

    kernel = functools.partial(double_conv_kernel,
                               h=h, w=w, cin=cin, cout=cout, sub=sub)

    def _full(arr):  # full-array, VMEM-resident weight (constant index_map)
        return pl.BlockSpec(arr.shape, lambda i, _a=arr: (0,) * _a.ndim)

    y = pl.pallas_call(
        kernel,
        out_shape=jax.ShapeDtypeStruct((n, h, w * cout), jnp.float32),
        grid=(n,),
        in_specs=[
            # activations: one image per grid step, pipelined/double-buffered
            pl.BlockSpec((None, h, w * cin), lambda i: (i, 0, 0)),
            # weights / biases: full arrays, constant index_map -> stay resident
            _full(wqk1), _full(bqk1), _full(wv1), _full(bv1), _full(wpsi1),
            _full(wqk2), _full(bqk2), _full(wv2), _full(bv2), _full(wpsi2),
            _full(expand),
            # two psi scalar biases in SMEM
            pl.BlockSpec(memory_space=pltpu.MemorySpace.SMEM),
        ],
        out_specs=pl.BlockSpec((None, h, w * cout), lambda i: (i, 0, 0)),
        scratch_shapes=[
            pltpu.VMEM((h + 2, (w + 2) * cin), jnp.float32),
            pltpu.VMEM((h + 2, (w + 2) * cout), jnp.float32),
        ],
        compiler_params=pltpu.CompilerParams(
            dimension_semantics=("parallel",),
            vmem_limit_bytes=32 * 1024 * 1024,
        ),
    )(x2d, wqk1, bqk1, wv1, bv1, wpsi1, wqk2, bqk2, wv2, bv2, wpsi2, expand, bpsi)

    # (N, H, W*Cout) -> NCHW (single exit transpose).
    return jnp.transpose(y.reshape(n, h, w, cout), (0, 3, 1, 2))


# ------------------------- deterministic parameters ---------------------------

def make_basic_params(key, cin, cout, ksz):
    """Conv2d + BatchNorm2d folded into an effective (OIHW weight, bias)."""
    ks = jax.random.split(key, 6)
    w = jax.random.normal(ks[0], (cout, cin, ksz, ksz), jnp.float32)
    w = w / jnp.sqrt(float(cin * ksz * ksz))
    b = 0.1 * jax.random.normal(ks[1], (cout,), jnp.float32)
    gamma = 1.0 + 0.1 * jax.random.normal(ks[2], (cout,), jnp.float32)
    beta = 0.1 * jax.random.normal(ks[3], (cout,), jnp.float32)
    mean = 0.1 * jax.random.normal(ks[4], (cout,), jnp.float32)
    var = 1.0 + 0.1 * jax.random.uniform(ks[5], (cout,), jnp.float32)
    scale = gamma / jnp.sqrt(var + BN_EPS)
    w_eff = w * scale[:, None, None, None]
    b_eff = (b - mean) * scale + beta
    return w_eff, b_eff


def make_attention_params(key, cin, cout):
    sub = cout // 4
    kq, kk, kv, kp = jax.random.split(key, 4)
    return {
        "q": make_basic_params(kq, cin, sub, 1),
        "k": make_basic_params(kk, cin, sub, 1),
        "v": make_basic_params(kv, cin, cout, 3),
        "psi": make_basic_params(kp, sub, 1, 1),
    }


# ----------------------------- pure-JAX reference ------------------------------

def _basic_ref(x_nchw, w_eff, b_eff, pad):
    y = jax.lax.conv_general_dilated(
        x_nchw, w_eff, (1, 1), [(pad, pad), (pad, pad)],
        dimension_numbers=("NCHW", "OIHW", "NCHW"))
    return jnp.maximum(y + b_eff[None, :, None, None], 0.0)


def _attention_ref(x, p):
    q = _basic_ref(x, *p["q"], 0)
    k = _basic_ref(x, *p["k"], 0)
    v = _basic_ref(x, *p["v"], 1)
    psi = jax.nn.sigmoid(_basic_ref(jnp.maximum(q * k, 0.0), *p["psi"], 0))
    return psi * v


# ----------------------------------- main --------------------------------------

if __name__ == "__main__":
    key = jax.random.PRNGKey(0)
    k_x, k_p1, k_p2 = jax.random.split(key, 3)

    in_channels, out_channels = 4, 8
    N, H, W = 2, 16, 16
    x = jax.random.normal(k_x, (N, in_channels, H, W), jnp.float32)

    params = (make_attention_params(k_p1, in_channels, out_channels),
              make_attention_params(k_p2, out_channels, out_channels))

    y = jax.jit(double_conv_forward)(x, params)
    y = jax.block_until_ready(y)

    assert y.shape == (N, out_channels, H, W), y.shape

    y_ref = _attention_ref(_attention_ref(x, params[0]), params[1])
    max_err = float(jnp.max(jnp.abs(y - y_ref)))
    if not bool(jnp.allclose(y, y_ref, atol=7e-2, rtol=7e-2)):
        raise AssertionError(
            f"Pallas output does not match JAX reference (max abs err {max_err:.4f})")

    print("KERNEL_OK")
</pallas_src>

<mosaic_0001>
module attributes {stable_mosaic.version = 11 : i64} {
  func.func @double_conv_kernel(%arg0: i32, %arg1: memref<1x16x64xf32, #tpu.memory_space<vmem>>, %arg2: memref<64x64xbf16, #tpu.memory_space<vmem>>, %arg3: memref<1x64xf32, #tpu.memory_space<vmem>>, %arg4: memref<3x72x128xbf16, #tpu.memory_space<vmem>>, %arg5: memref<1x128xf32, #tpu.memory_space<vmem>>, %arg6: memref<32x16xbf16, #tpu.memory_space<vmem>>, %arg7: memref<128x64xbf16, #tpu.memory_space<vmem>>, %arg8: memref<1x64xf32, #tpu.memory_space<vmem>>, %arg9: memref<3x144x128xbf16, #tpu.memory_space<vmem>>, %arg10: memref<1x128xf32, #tpu.memory_space<vmem>>, %arg11: memref<32x16xbf16, #tpu.memory_space<vmem>>, %arg12: memref<16x128xbf16, #tpu.memory_space<vmem>>, %arg13: memref<2xf32, #tpu.memory_space<smem>>, %arg14: memref<1x16x128xf32, #tpu.memory_space<vmem>>, %arg15: memref<18x72xf32, #tpu.memory_space<vmem>>, %arg16: memref<18x144xf32, #tpu.memory_space<vmem>>) attributes {dimension_semantics = [#tpu.dimension_semantics<parallel>], iteration_bounds = array<i64: 2>, scalar_prefetch = 0 : i64, scratch_operands = 2 : i64, tpu.core_type = #tpu.core_type<tc>, window_params = [{transform_indices = @transform_0, window_bounds = array<i64: 1, 16, 64>}, {pipeline_mode = #tpu.pipeline_mode<synchronous>, transform_indices = @transform_1, window_bounds = array<i64: 64, 64>}, {pipeline_mode = #tpu.pipeline_mode<synchronous>, transform_indices = @transform_2, window_bounds = array<i64: 1, 64>}, {pipeline_mode = #tpu.pipeline_mode<synchronous>, transform_indices = @transform_3, window_bounds = array<i64: 3, 72, 128>}, {pipeline_mode = #tpu.pipeline_mode<synchronous>, transform_indices = @transform_4, window_bounds = array<i64: 1, 128>}, {pipeline_mode = #tpu.pipeline_mode<synchronous>, transform_indices = @transform_5, window_bounds = array<i64: 32, 16>}, {pipeline_mode = #tpu.pipeline_mode<synchronous>, transform_indices = @transform_6, window_bounds = array<i64: 128, 64>}, {pipeline_mode = #tpu.pipeline_mode<synchronous>, transform_indices = @transform_7, window_bounds = array<i64: 1, 64>}, {pipeline_mode = #tpu.pipeline_mode<synchronous>, transform_indices = @transform_8, window_bounds = array<i64: 3, 144, 128>}, {pipeline_mode = #tpu.pipeline_mode<synchronous>, transform_indices = @transform_9, window_bounds = array<i64: 1, 128>}, {pipeline_mode = #tpu.pipeline_mode<synchronous>, transform_indices = @transform_10, window_bounds = array<i64: 32, 16>}, {pipeline_mode = #tpu.pipeline_mode<synchronous>, transform_indices = @transform_11, window_bounds = array<i64: 16, 128>}, {transform_indices = @transform_12, window_bounds = array<i64: 2>}, {transform_indices = @transform_13, window_bounds = array<i64: 1, 16, 128>}]} {
    %c0 = arith.constant 0 : index
    %c0_0 = arith.constant 0 : index
    %0 = vector.load %arg12[%c0, %c0_0] : memref<16x128xbf16, #tpu.memory_space<vmem>>, vector<16x128xbf16>
    %cst = arith.constant 0.000000e+00 : f32
    %1 = vector.broadcast %cst : f32 to vector<18x72xf32>
    %c0_1 = arith.constant 0 : index
    %c0_2 = arith.constant 0 : index
    %2 = vector.load %arg15[%c0_1, %c0_2] : memref<18x72xf32, #tpu.memory_space<vmem>>, vector<18x72xf32>
    tpu.vector_store %arg15[%c0_1, %c0_2], %1 {strides = array<i32>} : memref<18x72xf32, #tpu.memory_space<vmem>>, vector<18x72xf32>,
    %c0_3 = arith.constant 0 : index
    %c0_4 = arith.constant 0 : index
    %c0_5 = arith.constant 0 : index
    %3 = vector.load %arg1[%c0_3, %c0_4, %c0_5] : memref<1x16x64xf32, #tpu.memory_space<vmem>>, vector<1x16x64xf32>
    %4 = vector.shape_cast %3 : vector<1x16x64xf32> to vector<16x64xf32>
    %c1 = arith.constant 1 : index
    %c0_6 = arith.constant 0 : index
    %5 = vector.load %arg15[%c1, %c0_6] : memref<18x72xf32, #tpu.memory_space<vmem>>, vector<16x64xf32>
    tpu.vector_store %arg15[%c1, %c0_6], %4 {strides = array<i32>} : memref<18x72xf32, #tpu.memory_space<vmem>>, vector<16x64xf32>,
    %c0_7 = arith.constant 0 : index
    %6 = memref.load %arg13[%c0_7] : memref<2xf32, #tpu.memory_space<smem>>
    %c0_8 = arith.constant 0 : index
    %c0_9 = arith.constant 0 : index
    %7 = vector.load %arg15[%c0_8, %c0_9] : memref<18x72xf32, #tpu.memory_space<vmem>>, vector<18x72xf32>
    %8 = vector.extract_strided_slice %7 {offsets = [0, 0], sizes = [16, 72], strides = [1, 1]} : vector<18x72xf32> to vector<16x72xf32>
    %9 = arith.truncf %8 : vector<16x72xf32> to vector<16x72xbf16>
    %10 = vector.extract_strided_slice %7 {offsets = [1, 0], sizes = [16, 72], strides = [1, 1]} : vector<18x72xf32> to vector<16x72xf32>
    %11 = arith.truncf %10 : vector<16x72xf32> to vector<16x72xbf16>
    %12 = vector.extract_strided_slice %7 {offsets = [2, 0], sizes = [16, 72], strides = [1, 1]} : vector<18x72xf32> to vector<16x72xf32>
    %13 = arith.truncf %12 : vector<16x72xf32> to vector<16x72xbf16>
    %14 = vector.extract_strided_slice %11 {offsets = [0, 0], sizes = [16, 64], strides = [1, 1]} : vector<16x72xbf16> to vector<16x64xbf16>
    %c0_10 = arith.constant 0 : index
    %c0_11 = arith.constant 0 : index
    %15 = vector.load %arg2[%c0_10, %c0_11] : memref<64x64xbf16, #tpu.memory_space<vmem>>, vector<64x64xbf16>
    %cst_12 = arith.constant dense<0.000000e+00> : vector<16x64xf32>
    %16 = tpu.matmul %14, %15, %cst_12 {dimension_numbers = #tpu.dot_dimension_numbers<[1], [0], [0], [1], [0, 0, 1, 1], [], []>} : vector<16x64xbf16>, vector<64x64xbf16>, vector<16x64xf32> -> vector<16x64xf32>
    %c0_13 = arith.constant 0 : index
    %c0_14 = arith.constant 0 : index
    %17 = vector.load %arg3[%c0_13, %c0_14] : memref<1x64xf32, #tpu.memory_space<vmem>>, vector<1x64xf32>
    %18 = vector.broadcast %17 : vector<1x64xf32> to vector<16x64xf32>
    %19 = arith.addf %16, %18 : vector<16x64xf32>
    %cst_15 = arith.constant 0.000000e+00 : f32
    %20 = vector.broadcast %cst_15 : f32 to vector<16x64xf32>
    %21 = arith.maximumf %19, %20 : vector<16x64xf32>
    %22 = vector.extract_strided_slice %21 {offsets = [0, 0], sizes = [16, 32], strides = [1, 1]} : vector<16x64xf32> to vector<16x32xf32>
    %23 = vector.extract_strided_slice %21 {offsets = [0, 32], sizes = [16, 32], strides = [1, 1]} : vector<16x64xf32> to vector<16x32xf32>
    %c0_16 = arith.constant 0 : index
    %c0_17 = arith.constant 0 : index
    %c0_18 = arith.constant 0 : index
    %24 = vector.load %arg4[%c0_16, %c0_17, %c0_18] : memref<3x72x128xbf16, #tpu.memory_space<vmem>>, vector<1x72x128xbf16>
    %25 = vector.shape_cast %24 : vector<1x72x128xbf16> to vector<72x128xbf16>
    %cst_19 = arith.constant dense<0.000000e+00> : vector<16x128xf32>
    %26 = tpu.matmul %9, %25, %cst_19 {dimension_numbers = #tpu.dot_dimension_numbers<[1], [0], [0], [1], [0, 0, 1, 1], [], []>} : vector<16x72xbf16>, vector<72x128xbf16>, vector<16x128xf32> -> vector<16x128xf32>
    %c1_20 = arith.constant 1 : index
    %c0_21 = arith.constant 0 : index
    %c0_22 = arith.constant 0 : index
    %27 = vector.load %arg4[%c1_20, %c0_21, %c0_22] : memref<3x72x128xbf16, #tpu.memory_space<vmem>>, vector<1x72x128xbf16>
    %28 = vector.shape_cast %27 : vector<1x72x128xbf16> to vector<72x128xbf16>
    %cst_23 = arith.constant dense<0.000000e+00> : vector<16x128xf32>
    %29 = tpu.matmul %11, %28, %cst_23 {dimension_numbers = #tpu.dot_dimension_numbers<[1], [0], [0], [1], [0, 0, 1, 1], [], []>} : vector<16x72xbf16>, vector<72x128xbf16>, vector<16x128xf32> -> vector<16x128xf32>
    %30 = arith.addf %26, %29 : vector<16x128xf32>
    %c2 = arith.constant 2 : index
    %c0_24 = arith.constant 0 : index
    %c0_25 = arith.constant 0 : index
    %31 = vector.load %arg4[%c2, %c0_24, %c0_25] : memref<3x72x128xbf16, #tpu.memory_space<vmem>>, vector<1x72x128xbf16>
    %32 = vector.shape_cast %31 : vector<1x72x128xbf16> to vector<72x128xbf16>
    %cst_26 = arith.constant dense<0.000000e+00> : vector<16x128xf32>
    %33 = tpu.matmul %13, %32, %cst_26 {dimension_numbers = #tpu.dot_dimension_numbers<[1], [0], [0], [1], [0, 0, 1, 1], [], []>} : vector<16x72xbf16>, vector<72x128xbf16>, vector<16x128xf32> -> vector<16x128xf32>
    %34 = arith.addf %30, %33 : vector<16x128xf32>
    %c0_27 = arith.constant 0 : index
    %c0_28 = arith.constant 0 : index
    %35 = vector.load %arg5[%c0_27, %c0_28] : memref<1x128xf32, #tpu.memory_space<vmem>>, vector<1x128xf32>
    %36 = vector.broadcast %35 : vector<1x128xf32> to vector<16x128xf32>
    %37 = arith.addf %34, %36 : vector<16x128xf32>
    %cst_29 = arith.constant 0.000000e+00 : f32
    %38 = vector.broadcast %cst_29 : f32 to vector<16x128xf32>
    %39 = arith.maximumf %37, %38 : vector<16x128xf32>
    %40 = arith.mulf %22, %23 : vector<16x32xf32>
    %41 = arith.truncf %40 : vector<16x32xf32> to vector<16x32xbf16>
    %c0_30 = arith.constant 0 : index
    %c0_31 = arith.constant 0 : index
    %42 = vector.load %arg6[%c0_30, %c0_31] : memref<32x16xbf16, #tpu.memory_space<vmem>>, vector<32x16xbf16>
    %cst_32 = arith.constant dense<0.000000e+00> : vector<16x16xf32>
    %43 = tpu.matmul %41, %42, %cst_32 {dimension_numbers = #tpu.dot_dimension_numbers<[1], [0], [0], [1], [0, 0, 1, 1], [], []>} : vector<16x32xbf16>, vector<32x16xbf16>, vector<16x16xf32> -> vector<16x16xf32>
    %44 = vector.broadcast %6 : f32 to vector<16x16xf32>
    %45 = arith.addf %43, %44 : vector<16x16xf32>
    %cst_33 = arith.constant 0.000000e+00 : f32
    %46 = vector.broadcast %cst_33 : f32 to vector<16x16xf32>
    %47 = arith.maximumf %45, %46 : vector<16x16xf32>
    %cst_34 = arith.constant 0.000000e+00 : f32
    %48 = vector.broadcast %cst_34 : f32 to vector<16x16xf32>
    %49 = arith.subf %48, %47 : vector<16x16xf32>
    %50 = math.exp %49 : vector<16x16xf32>
    %cst_35 = arith.constant 1.000000e+00 : f32
    %51 = vector.broadcast %cst_35 : f32 to vector<16x16xf32>
    %52 = arith.addf %51, %50 : vector<16x16xf32>
    %cst_36 = arith.constant 1.000000e+00 : f32
    %53 = vector.broadcast %cst_36 : f32 to vector<16x16xf32>
    %54 = arith.divf %53, %52 : vector<16x16xf32>
    %55 = arith.truncf %54 : vector<16x16xf32> to vector<16x16xbf16>
    %cst_37 = arith.constant dense<0.000000e+00> : vector<16x128xf32>
    %56 = tpu.matmul %55, %0, %cst_37 {dimension_numbers = #tpu.dot_dimension_numbers<[1], [0], [0], [1], [0, 0, 1, 1], [], []>} : vector<16x16xbf16>, vector<16x128xbf16>, vector<16x128xf32> -> vector<16x128xf32>
    %57 = arith.mulf %56, %39 : vector<16x128xf32>
    %cst_38 = arith.constant 0.000000e+00 : f32
    %58 = vector.broadcast %cst_38 : f32 to vector<18x144xf32>
    %c0_39 = arith.constant 0 : index
    %c0_40 = arith.constant 0 : index
    %59 = vector.load %arg16[%c0_39, %c0_40] : memref<18x144xf32, #tpu.memory_space<vmem>>, vector<18x144xf32>
    tpu.vector_store %arg16[%c0_39, %c0_40], %58 {strides = array<i32>} : memref<18x144xf32, #tpu.memory_space<vmem>>, vector<18x144xf32>,
    %c1_41 = arith.constant 1 : index
    %c0_42 = arith.constant 0 : index
    %60 = vector.load %arg16[%c1_41, %c0_42] : memref<18x144xf32, #tpu.memory_space<vmem>>, vector<16x128xf32>
    tpu.vector_store %arg16[%c1_41, %c0_42], %57 {strides = array<i32>} : memref<18x144xf32, #tpu.memory_space<vmem>>, vector<16x128xf32>,
    %c1_43 = arith.constant 1 : index
    %61 = memref.load %arg13[%c1_43] : memref<2xf32, #tpu.memory_space<smem>>
    %c0_44 = arith.constant 0 : index
    %c0_45 = arith.constant 0 : index
    %62 = vector.load %arg16[%c0_44, %c0_45] : memref<18x144xf32, #tpu.memory_space<vmem>>, vector<18x144xf32>
    %63 = vector.extract_strided_slice %62 {offsets = [0, 0], sizes = [16, 144], strides = [1, 1]} : vector<18x144xf32> to vector<16x144xf32>
    %64 = arith.truncf %63 : vector<16x144xf32> to vector<16x144xbf16>
    %65 = vector.extract_strided_slice %62 {offsets = [1, 0], sizes = [16, 144], strides = [1, 1]} : vector<18x144xf32> to vector<16x144xf32>
    %66 = arith.truncf %65 : vector<16x144xf32> to vector<16x144xbf16>
    %67 = vector.extract_strided_slice %62 {offsets = [2, 0], sizes = [16, 144], strides = [1, 1]} : vector<18x144xf32> to vector<16x144xf32>
    %68 = arith.truncf %67 : vector<16x144xf32> to vector<16x144xbf16>
    %69 = vector.extract_strided_slice %66 {offsets = [0, 0], sizes = [16, 128], strides = [1, 1]} : vector<16x144xbf16> to vector<16x128xbf16>
    %c0_46 = arith.constant 0 : index
    %c0_47 = arith.constant 0 : index
    %70 = vector.load %arg7[%c0_46, %c0_47] : memref<128x64xbf16, #tpu.memory_space<vmem>>, vector<128x64xbf16>
    %cst_48 = arith.constant dense<0.000000e+00> : vector<16x64xf32>
    %71 = tpu.matmul %69, %70, %cst_48 {dimension_numbers = #tpu.dot_dimension_numbers<[1], [0], [0], [1], [0, 0, 1, 1], [], []>} : vector<16x128xbf16>, vector<128x64xbf16>, vector<16x64xf32> -> vector<16x64xf32>
    %c0_49 = arith.constant 0 : index
    %c0_50 = arith.constant 0 : index
    %72 = vector.load %arg8[%c0_49, %c0_50] : memref<1x64xf32, #tpu.memory_space<vmem>>, vector<1x64xf32>
    %73 = vector.broadcast %72 : vector<1x64xf32> to vector<16x64xf32>
    %74 = arith.addf %71, %73 : vector<16x64xf32>
    %cst_51 = arith.constant 0.000000e+00 : f32
    %75 = vector.broadcast %cst_51 : f32 to vector<16x64xf32>
    %76 = arith.maximumf %74, %75 : vector<16x64xf32>
    %77 = vector.extract_strided_slice %76 {offsets = [0, 0], sizes = [16, 32], strides = [1, 1]} : vector<16x64xf32> to vector<16x32xf32>
    %78 = vector.extract_strided_slice %76 {offsets = [0, 32], sizes = [16, 32], strides = [1, 1]} : vector<16x64xf32> to vector<16x32xf32>
    %c0_52 = arith.constant 0 : index
    %c0_53 = arith.constant 0 : index
    %c0_54 = arith.constant 0 : index
    %79 = vector.load %arg9[%c0_52, %c0_53, %c0_54] : memref<3x144x128xbf16, #tpu.memory_space<vmem>>, vector<1x144x128xbf16>
    %80 = vector.shape_cast %79 : vector<1x144x128xbf16> to vector<144x128xbf16>
    %cst_55 = arith.constant dense<0.000000e+00> : vector<16x128xf32>
    %81 = tpu.matmul %64, %80, %cst_55 {dimension_numbers = #tpu.dot_dimension_numbers<[1], [0], [0], [1], [0, 0, 1, 1], [], []>} : vector<16x144xbf16>, vector<144x128xbf16>, vector<16x128xf32> -> vector<16x128xf32>
    %c1_56 = arith.constant 1 : index
    %c0_57 = arith.constant 0 : index
    %c0_58 = arith.constant 0 : index
    %82 = vector.load %arg9[%c1_56, %c0_57, %c0_58] : memref<3x144x128xbf16, #tpu.memory_space<vmem>>, vector<1x144x128xbf16>
    %83 = vector.shape_cast %82 : vector<1x144x128xbf16> to vector<144x128xbf16>
    %cst_59 = arith.constant dense<0.000000e+00> : vector<16x128xf32>
    %84 = tpu.matmul %66, %83, %cst_59 {dimension_numbers = #tpu.dot_dimension_numbers<[1], [0], [0], [1], [0, 0, 1, 1], [], []>} : vector<16x144xbf16>, vector<144x128xbf16>, vector<16x128xf32> -> vector<16x128xf32>
    %85 = arith.addf %81, %84 : vector<16x128xf32>
    %c2_60 = arith.constant 2 : index
    %c0_61 = arith.constant 0 : index
    %c0_62 = arith.constant 0 : index
    %86 = vector.load %arg9[%c2_60, %c0_61, %c0_62] : memref<3x144x128xbf16, #tpu.memory_space<vmem>>, vector<1x144x128xbf16>
    %87 = vector.shape_cast %86 : vector<1x144x128xbf16> to vector<144x128xbf16>
    %cst_63 = arith.constant dense<0.000000e+00> : vector<16x128xf32>
    %88 = tpu.matmul %68, %87, %cst_63 {dimension_numbers = #tpu.dot_dimension_numbers<[1], [0], [0], [1], [0, 0, 1, 1], [], []>} : vector<16x144xbf16>, vector<144x128xbf16>, vector<16x128xf32> -> vector<16x128xf32>
    %89 = arith.addf %85, %88 : vector<16x128xf32>
    %c0_64 = arith.constant 0 : index
    %c0_65 = arith.constant 0 : index
    %90 = vector.load %arg10[%c0_64, %c0_65] : memref<1x128xf32, #tpu.memory_space<vmem>>, vector<1x128xf32>
    %91 = vector.broadcast %90 : vector<1x128xf32> to vector<16x128xf32>
    %92 = arith.addf %89, %91 : vector<16x128xf32>
    %cst_66 = arith.constant 0.000000e+00 : f32
    %93 = vector.broadcast %cst_66 : f32 to vector<16x128xf32>
    %94 = arith.maximumf %92, %93 : vector<16x128xf32>
    %95 = arith.mulf %77, %78 : vector<16x32xf32>
    %96 = arith.truncf %95 : vector<16x32xf32> to vector<16x32xbf16>
    %c0_67 = arith.constant 0 : index
    %c0_68 = arith.constant 0 : index
    %97 = vector.load %arg11[%c0_67, %c0_68] : memref<32x16xbf16, #tpu.memory_space<vmem>>, vector<32x16xbf16>
    %cst_69 = arith.constant dense<0.000000e+00> : vector<16x16xf32>
    %98 = tpu.matmul %96, %97, %cst_69 {dimension_numbers = #tpu.dot_dimension_numbers<[1], [0], [0], [1], [0, 0, 1, 1], [], []>} : vector<16x32xbf16>, vector<32x16xbf16>, vector<16x16xf32> -> vector<16x16xf32>
    %99 = vector.broadcast %61 : f32 to vector<16x16xf32>
    %100 = arith.addf %98, %99 : vector<16x16xf32>
    %cst_70 = arith.constant 0.000000e+00 : f32
    %101 = vector.broadcast %cst_70 : f32 to vector<16x16xf32>
    %102 = arith.maximumf %100, %101 : vector<16x16xf32>
    %cst_71 = arith.constant 0.000000e+00 : f32
    %103 = vector.broadcast %cst_71 : f32 to vector<16x16xf32>
    %104 = arith.subf %103, %102 : vector<16x16xf32>
    %105 = math.exp %104 : vector<16x16xf32>
    %cst_72 = arith.constant 1.000000e+00 : f32
    %106 = vector.broadcast %cst_72 : f32 to vector<16x16xf32>
    %107 = arith.addf %106, %105 : vector<16x16xf32>
    %cst_73 = arith.constant 1.000000e+00 : f32
    %108 = vector.broadcast %cst_73 : f32 to vector<16x16xf32>
    %109 = arith.divf %108, %107 : vector<16x16xf32>
    %110 = arith.truncf %109 : vector<16x16xf32> to vector<16x16xbf16>
    %cst_74 = arith.constant dense<0.000000e+00> : vector<16x128xf32>
    %111 = tpu.matmul %110, %0, %cst_74 {dimension_numbers = #tpu.dot_dimension_numbers<[1], [0], [0], [1], [0, 0, 1, 1], [], []>} : vector<16x16xbf16>, vector<16x128xbf16>, vector<16x128xf32> -> vector<16x128xf32>
    %112 = arith.mulf %111, %94 : vector<16x128xf32>
    %c0_75 = arith.constant 0 : index
    %c0_76 = arith.constant 0 : index
    %c0_77 = arith.constant 0 : index
    %113 = vector.load %arg14[%c0_75, %c0_76, %c0_77] : memref<1x16x128xf32, #tpu.memory_space<vmem>>, vector<1x16x128xf32>
    %114 = vector.shape_cast %113 : vector<1x16x128xf32> to vector<16x128xf32>
    %115 = vector.shape_cast %112 : vector<16x128xf32> to vector<1x16x128xf32>
    tpu.vector_store %arg14[%c0_75, %c0_76, %c0_77], %115 {strides = array<i32>} : memref<1x16x128xf32, #tpu.memory_space<vmem>>, vector<1x16x128xf32>,
    return
  }
  func.func @transform_0(%arg0: i32) -> (i32, i32, i32) {
    %c0_i32 = arith.constant 0 : i32
    %c0_i32_0 = arith.constant 0 : i32
    %c0_i32_1 = arith.constant 0 : i32
    return %arg0, %c0_i32, %c0_i32_0 : i32, i32, i32
  }
  func.func @transform_1(%arg0: i32) -> (i32, i32) {
    %c0_i32 = arith.constant 0 : i32
    %c0_i32_0 = arith.constant 0 : i32
    %c0_i32_1 = arith.constant 0 : i32
    return %c0_i32, %c0_i32_0 : i32, i32
  }
  func.func @transform_2(%arg0: i32) -> (i32, i32) {
    %c0_i32 = arith.constant 0 : i32
    %c0_i32_0 = arith.constant 0 : i32
    %c0_i32_1 = arith.constant 0 : i32
    return %c0_i32, %c0_i32_0 : i32, i32
  }
  func.func @transform_3(%arg0: i32) -> (i32, i32, i32) {
    %c0_i32 = arith.constant 0 : i32
    %c0_i32_0 = arith.constant 0 : i32
    %c0_i32_1 = arith.constant 0 : i32
    %c0_i32_2 = arith.constant 0 : i32
    return %c0_i32, %c0_i32_0, %c0_i32_1 : i32, i32, i32
  }
  func.func @transform_4(%arg0: i32) -> (i32, i32) {
    %c0_i32 = arith.constant 0 : i32
    %c0_i32_0 = arith.constant 0 : i32
    %c0_i32_1 = arith.constant 0 : i32
    return %c0_i32, %c0_i32_0 : i32, i32
  }
  func.func @transform_5(%arg0: i32) -> (i32, i32) {
    %c0_i32 = arith.constant 0 : i32
    %c0_i32_0 = arith.constant 0 : i32
    %c0_i32_1 = arith.constant 0 : i32
    return %c0_i32, %c0_i32_0 : i32, i32
  }
  func.func @transform_6(%arg0: i32) -> (i32, i32) {
    %c0_i32 = arith.constant 0 : i32
    %c0_i32_0 = arith.constant 0 : i32
    %c0_i32_1 = arith.constant 0 : i32
    return %c0_i32, %c0_i32_0 : i32, i32
  }
  func.func @transform_7(%arg0: i32) -> (i32, i32) {
    %c0_i32 = arith.constant 0 : i32
    %c0_i32_0 = arith.constant 0 : i32
    %c0_i32_1 = arith.constant 0 : i32
    return %c0_i32, %c0_i32_0 : i32, i32
  }
  func.func @transform_8(%arg0: i32) -> (i32, i32, i32) {
    %c0_i32 = arith.constant 0 : i32
    %c0_i32_0 = arith.constant 0 : i32
    %c0_i32_1 = arith.constant 0 : i32
    %c0_i32_2 = arith.constant 0 : i32
    return %c0_i32, %c0_i32_0, %c0_i32_1 : i32, i32, i32
  }
  func.func @transform_9(%arg0: i32) -> (i32, i32) {
    %c0_i32 = arith.constant 0 : i32
    %c0_i32_0 = arith.constant 0 : i32
    %c0_i32_1 = arith.constant 0 : i32
    return %c0_i32, %c0_i32_0 : i32, i32
  }
  func.func @transform_10(%arg0: i32) -> (i32, i32) {
    %c0_i32 = arith.constant 0 : i32
    %c0_i32_0 = arith.constant 0 : i32
    %c0_i32_1 = arith.constant 0 : i32
    return %c0_i32, %c0_i32_0 : i32, i32
  }
  func.func @transform_11(%arg0: i32) -> (i32, i32) {
    %c0_i32 = arith.constant 0 : i32
    %c0_i32_0 = arith.constant 0 : i32
    %c0_i32_1 = arith.constant 0 : i32
    return %c0_i32, %c0_i32_0 : i32, i32
  }
  func.func @transform_12(%arg0: i32) -> i32 {
    %c0_i32 = arith.constant 0 : i32
    %c0_i32_0 = arith.constant 0 : i32
    return %c0_i32 : i32
  }
  func.func @transform_13(%arg0: i32) -> (i32, i32, i32) {
    %c0_i32 = arith.constant 0 : i32
    %c0_i32_0 = arith.constant 0 : i32
    %c0_i32_1 = arith.constant 0 : i32
    return %arg0, %c0_i32, %c0_i32_0 : i32, i32, i32
  }
}

</mosaic_0001>

<llo_original>
// kernel: tile.43
$region0: #{tile.43}
  #allocation0 [shape = 's32[1]{0}', space=sflag, size = 0x4, scoped, tag = 'scoped memory for tile.43']
  %s0 = inlined_call_operand.vmem [shape: f32[8], index: 0, kind: input, shape index: {}]
  %s1 = inlined_call_operand.vmem [shape: f32[16,8], index: 1, kind: output, shape index: {}]
  // Predicated region
  $region2: #{tile.43} parent=0 // pred_check
    _
  $region3: #{tile.43} parent=0 // pred_check_branch
    %3 = sbr.rel (0) target = $region5
  $region4: #{tile.43} parent=0 // pred_region
    _
  $region5: #{tile.43} parent=0 // pred_fallthru
    _
  %v4 = vld [vmem:[%s0] ss:$0 sm:$0xff]
  %5 = vst [vmem:[%s1] sm:$0xff] %v4
  %s6 = scalar_lea.vmem %s1, 8
  %7 = vst [vmem:[%s6] sm:$0xff] %v4

// kernel: tile.44
$region0: #{tile.44}
  %s0 = inlined_call_operand.vmem [shape: f32[16,8], index: 0, kind: input, shape index: {}]
  %s1 = inlined_call_operand.vmem [shape: f32[1,128], index: 1, kind: output, shape index: {}]
  $region1: #{tile.44} parent=0
    #allocation0 [shape = 'u8[4096]{0}', space=vmem, size = 0x1000, scoped, tag = 'scoped mem for output reshape']
    %v2 = vld [vmem:[%s0] sm:$0x1]
    %vm3 = vcmask 64512
    %4 = vst.msk [vmem:[#allocation0] sm:$0x1] %vm3, %v2
    %s5 = scalar_lea.vmem %s0, 15
    %v6 = vld [vmem:[%s5] sm:$0x1]
    %7 = vrot.lane.b32.xlu0 %v6, 120
    %v8 = vpop.permute.xlu0 %7
    %vm9 = vcmask 1048512
    %10 = vst.msk [vmem:[#allocation0] sm:$0x1] %vm9, %v8
    %s11 = scalar_lea.vmem %s0, 14
    %v12 = vld [vmem:[%s11] sm:$0x1]
    %13 = vrot.lane.b32.xlu0 %v12, 112
    %v14 = vpop.permute.xlu0 %13
    %vm15 = vcmask 982912
    %16 = vst.msk [vmem:[#allocation0] sm:$0x1] %vm15, %v14
    %s17 = scalar_lea.vmem %s0, 13
    %v18 = vld [vmem:[%s17] sm:$0x1]
    %19 = vrot.lane.b32.xlu0 %v18, 104
    %v20 = vpop.permute.xlu0 %19
    %vm21 = vcmask 917312
    %22 = vst.msk [vmem:[#allocation0] sm:$0x1] %vm21, %v20
    %s23 = scalar_lea.vmem %s0, 12
    %v24 = vld [vmem:[%s23] sm:$0x1]
    %25 = vrot.lane.b32.xlu0 %v24, 96
    %v26 = vpop.permute.xlu0 %25
    %vm27 = vcmask 851712
    %28 = vst.msk [vmem:[#allocation0] sm:$0x1] %vm27, %v26
    %s29 = scalar_lea.vmem %s0, 11
    %v30 = vld [vmem:[%s29] sm:$0x1]
    %31 = vrot.lane.b32.xlu0 %v30, 88
    %v32 = vpop.permute.xlu0 %31
    %vm33 = vcmask 786112
    %34 = vst.msk [vmem:[#allocation0] sm:$0x1] %vm33, %v32
    %s35 = scalar_lea.vmem %s0, 10
    %v36 = vld [vmem:[%s35] sm:$0x1]
    %37 = vrot.lane.b32.xlu0 %v36, 80
    %v38 = vpop.permute.xlu0 %37
    %vm39 = vcmask 720512
    %40 = vst.msk [vmem:[#allocation0] sm:$0x1] %vm39, %v38
    %s41 = scalar_lea.vmem %s0, 9
    %v42 = vld [vmem:[%s41] sm:$0x1]
    %43 = vrot.lane.b32.xlu0 %v42, 72
    %v44 = vpop.permute.xlu0 %43
    %vm45 = vcmask 654912
    %46 = vst.msk [vmem:[#allocation0] sm:$0x1] %vm45, %v44
    %s47 = scalar_lea.vmem %s0, 8
    %v48 = vld [vmem:[%s47] sm:$0x1]
    %49 = vrot.lane.b32.xlu0 %v48, 64
    %v50 = vpop.permute.xlu0 %49
    %vm51 = vcmask 589312
    %52 = vst.msk [vmem:[#allocation0] sm:$0x1] %vm51, %v50
    %s53 = scalar_lea.vmem %s0, 7
    %v54 = vld [vmem:[%s53] sm:$0x1]
    %55 = vrot.lane.b32.xlu0 %v54, 56
    %v56 = vpop.permute.xlu0 %55
    %vm57 = vcmask 523712
    %58 = vst.msk [vmem:[#allocation0] sm:$0x1] %vm57, %v56
    %s59 = scalar_lea.vmem %s0, 6
    %v60 = vld [vmem:[%s59] sm:$0x1]
    %61 = vrot.lane.b32.xlu0 %v60, 48
    %v62 = vpop.permute.xlu0 %61
    %vm63 = vcmask 458112
    %64 = vst.msk [vmem:[#allocation0] sm:$0x1] %vm63, %v62
    %s65 = scalar_lea.vmem %s0, 5
    %v66 = vld [vmem:[%s65] sm:$0x1]
    %67 = vrot.lane.b32.xlu0 %v66, 40
    %v68 = vpop.permute.xlu0 %67
    %vm69 = vcmask 392512
    %70 = vst.msk [vmem:[#allocation0] sm:$0x1] %vm69, %v68
    %s71 = scalar_lea.vmem %s0, 4
    %v72 = vld [vmem:[%s71] sm:$0x1]
    %73 = vrot.lane.b32.xlu0 %v72, 32
    %v74 = vpop.permute.xlu0 %73
    %vm75 = vcmask 326912
    %76 = vst.msk [vmem:[#allocation0] sm:$0x1] %vm75, %v74
    %s77 = scalar_lea.vmem %s0, 3
    %v78 = vld [vmem:[%s77] sm:$0x1]
    %79 = vrot.lane.b32.xlu0 %v78, 24
    %v80 = vpop.permute.xlu0 %79
    %vm81 = vcmask 261312
    %82 = vst.msk [vmem:[#allocation0] sm:$0x1] %vm81, %v80
    %s83 = scalar_lea.vmem %s0, 2
    %v84 = vld [vmem:[%s83] sm:$0x1]
    %85 = vrot.lane.b32.xlu0 %v84, 16
    %v86 = vpop.permute.xlu0 %85
    %vm87 = vcmask 195712
    %88 = vst.msk [vmem:[#allocation0] sm:$0x1] %vm87, %v86
    %s89 = scalar_lea.vmem %s0, 1
    %v90 = vld [vmem:[%s89] sm:$0x1]
    %91 = vrot.lane.b32.xlu0 %v90, 8
    %v92 = vpop.permute.xlu0 %91
    %vm93 = vcmask 130112
    %94 = vst.msk [vmem:[#allocation0] sm:$0x1] %vm93, %v92
    %s96 = sshllo.u32 0, 1
    %v98 = vld [vmem:[#allocation0] sm:%s96]
    %s99 = sshllo.u32 0, 1
    %100 = vst [vmem:[%s1] sm:%s99] %v98

// kernel: double_conv_forward.1
$region0: #{double_conv_forward.1}
  #allocation0 [shape = 'u32[]', space=smem, size = 0x4, offset = 0x4, fixed_abs, tag = 'smem constant byte address 0x4 - core index']
  #allocation1 [shape = 'u32[144,128]{1,0:T(1,128)}', space=vmem, size = 0x12000, scoped, tag = 'internal scratch']
  #allocation2 [shape = 'f32[18,72]{1,0:T(8,128)}', space=vmem, size = 0x3000, scoped, tag = 'scratch operand']
  #allocation3 [shape = 'f32[18,144]{1,0:T(8,128)}', space=vmem, size = 0x6000, scoped, tag = 'scratch operand']
  %s0 = inlined_call_operand.vmem [shape: f32[2,16,64], index: 0, kind: input, shape index: {}]
  %s1 = inlined_call_operand.vmem [shape: bf16[64,64], index: 1, kind: input, shape index: {}]
  %s2 = inlined_call_operand.vmem [shape: f32[1,64], index: 2, kind: input, shape index: {}]
  %s3 = inlined_call_operand.vmem [shape: bf16[3,72,128], index: 3, kind: input, shape index: {}]
  %s4 = inlined_call_operand.vmem [shape: f32[1,128], index: 4, kind: input, shape index: {}]
  %s5 = inlined_call_operand.vmem [shape: bf16[32,16], index: 5, kind: input, shape index: {}]
  %s6 = inlined_call_operand.vmem [shape: bf16[128,64], index: 6, kind: input, shape index: {}]
  %s7 = inlined_call_operand.vmem [shape: f32[1,64], index: 7, kind: input, shape index: {}]
  %s8 = inlined_call_operand.vmem [shape: bf16[3,144,128], index: 8, kind: input, shape index: {}]
  %s9 = inlined_call_operand.vmem [shape: f32[1,128], index: 9, kind: input, shape index: {}]
  %s10 = inlined_call_operand.vmem [shape: bf16[32,16], index: 10, kind: input, shape index: {}]
  %s11 = inlined_call_operand.vmem [shape: bf16[16,128], index: 11, kind: input, shape index: {}]
  %s12 = inlined_call_operand.vmem [shape: f32[2], index: 12, kind: input, shape index: {}]
  %s13 = inlined_call_operand.vmem [shape: f32[2,16,128], index: 13, kind: output, shape index: {}]
  %s14 = sld [smem:[#allocation0]]
  $region89: #{double_conv_forward.1} parent=0
    _
  %s16 = ssub.s32 1, %s14
  %s17 = scalar_select 0, %s16, %s14
  $region1: #{double_conv_forward.1} parent=0
    #allocation4 [shape = 'u8[512]{0}', space=smem, size = 0x200, scoped, tag = 'input window, operand 12, single buffered']
    #allocation5 [shape = 's32[2]{0}', space=sflag, size = 0x8, scoped, tag = 'scoped memory for double_conv_forward.1']
    %18 = vsyncpa [#allocation5], 0
    loop: start=0, step=1, limit=4
    $region2: #{double_conv_forward.1} parent=1 // loop_pre_header
      _
    $region3: #{double_conv_forward.1} parent=1 // loop_header
      %s20 = sphi 0, %s24
      %p21 = scmp.ge.s32.totalorder %s20, 4
      %s30 = sphi 0, %s32
      %s33 = sphi 0, %s30
      %s34 = sphi 0, %s33
      %s50 = sphi 0, %s34
      %s54 = sphi 0, %s54
      %s56 = sphi 0, %s54
      %s57 = sphi 0, %s56
      %s71 = sphi 0, %s57
      %s75 = sphi 0, %s75
      %s77 = sphi 0, %s75
      %s78 = sphi 0, %s77
      %s92 = sphi 0, %s78
      %s96 = sphi 0, %s96
      %s98 = sphi 0, %s96
      %s99 = sphi 0, %s98
      %s113 = sphi 0, %s99
      %s117 = sphi 0, %s117
      %s119 = sphi 0, %s117
      %s120 = sphi 0, %s119
      %s134 = sphi 0, %s120
      %s138 = sphi 0, %s138
      %s140 = sphi 0, %s138
      %s141 = sphi 0, %s140
      %s155 = sphi 0, %s141
      %s159 = sphi 0, %s159
      %s161 = sphi 0, %s159
      %s162 = sphi 0, %s161
      %s176 = sphi 0, %s162
      %s180 = sphi 0, %s180
      %s182 = sphi 0, %s180
      %s183 = sphi 0, %s182
      %s197 = sphi 0, %s183
      %s201 = sphi 0, %s201
      %s203 = sphi 0, %s201
      %s204 = sphi 0, %s203
      %s218 = sphi 0, %s204
      %s222 = sphi 0, %s222
      %s224 = sphi 0, %s222
      %s225 = sphi 0, %s224
      %s239 = sphi 0, %s225
      %s243 = sphi 0, %s243
      %s245 = sphi 0, %s243
      %s246 = sphi 0, %s245
      %s260 = sphi 0, %s246
      %s264 = sphi 0, %s264
      %s266 = sphi 0, %s264
      %s267 = sphi 0, %s266
      %s281 = sphi 0, %s267
      %s285 = sphi 0, %s285
      %s287 = sphi 0, %s285
      %s288 = sphi 0, %s287
      %s302 = sphi 0, %s288
      %s308 = sphi 0, %s310
      %s311 = sphi 0, %s308
      %s312 = sphi 0, %s311
      %s328 = sphi 0, %s312
    $region4: #{double_conv_forward.1} parent=1 // loop_header_branch
      %23 = sbr.rel (%p21) target = $region8
    $region5: #{double_conv_forward.1} parent=1 // loop_body
      %s25 = ssub.s32 %s20, 1
      %s26 = ssub.s32 %s20, 2
      %s27 = sadd.s32 %s20, 1
      %s28 = ssub.s32 %s20, %s27
      %p29 = scmp.eq.s32.totalorder %s28, 0
      %s31 = sadd.s32 %s30, 1
      %s32 = scalar_select %p29, %s30, %s31
      %p35 = pneg %p29
      %p36 = scmp.eq.s32.totalorder %s20, 1
      %p37 = por %p35, %p36
      %p38 = scmp.ne.s32.totalorder %s30, %s33
      %p39 = scmp.eq.s32.totalorder %s20, 0
      %p40 = por %p38, %p39
      %p41 = scmp.ne.s32.totalorder %s30, %s33
      %p42 = scmp.eq.s32.totalorder %s25, 1
      %p43 = por %p41, %p42
      %p44 = scmp.ne.s32.totalorder %s33, %s34
      %p45 = scmp.eq.s32.totalorder %s25, 0
      %p46 = por %p44, %p45
      %p47 = scmp.ne.s32.totalorder %s33, %s34
      %p48 = scmp.eq.s32.totalorder %s26, 1
      %p49 = por %p47, %p48
      %p51 = scmp.ne.s32.totalorder %s34, %s50
      %p52 = scmp.eq.s32.totalorder %s26, 0
      %p53 = por %p51, %p52
      %s55 = sadd.s32 %s54, 1
      %p58 = scmp.eq.s32.totalorder %s20, 1
      %p59 = scmp.ne.s32.totalorder %s54, %s56
      %p60 = scmp.eq.s32.totalorder %s20, 0
      %p61 = por %p59, %p60
      %p62 = scmp.ne.s32.totalorder %s54, %s56
      %p63 = scmp.eq.s32.totalorder %s25, 1
      %p64 = por %p62, %p63
      %p65 = scmp.ne.s32.totalorder %s56, %s57
      %p66 = scmp.eq.s32.totalorder %s25, 0
      %p67 = por %p65, %p66
      %p68 = scmp.ne.s32.totalorder %s56, %s57
      %p69 = scmp.eq.s32.totalorder %s26, 1
      %p70 = por %p68, %p69
      %p72 = scmp.ne.s32.totalorder %s57, %s71
      %p73 = scmp.eq.s32.totalorder %s26, 0
      %p74 = por %p72, %p73
      %s76 = sadd.s32 %s75, 1
      %p79 = scmp.eq.s32.totalorder %s20, 1
      %p80 = scmp.ne.s32.totalorder %s75, %s77
      %p81 = scmp.eq.s32.totalorder %s20, 0
      %p82 = por %p80, %p81
      %p83 = scmp.ne.s32.totalorder %s75, %s77
      %p84 = scmp.eq.s32.totalorder %s25, 1
      %p85 = por %p83, %p84
      %p86 = scmp.ne.s32.totalorder %s77, %s78
      %p87 = scmp.eq.s32.totalorder %s25, 0
      %p88 = por %p86, %p87
      %p89 = scmp.ne.s32.totalorder %s77, %s78
      %p90 = scmp.eq.s32.totalorder %s26, 1
      %p91 = por %p89, %p90
      %p93 = scmp.ne.s32.totalorder %s78, %s92
      %p94 = scmp.eq.s32.totalorder %s26, 0
      %p95 = por %p93, %p94
      %s97 = sadd.s32 %s96, 1
      %p100 = scmp.eq.s32.totalorder %s20, 1
      %p101 = scmp.ne.s32.totalorder %s96, %s98
      %p102 = scmp.eq.s32.totalorder %s20, 0
      %p103 = por %p101, %p102
      %p104 = scmp.ne.s32.totalorder %s96, %s98
      %p105 = scmp.eq.s32.totalorder %s25, 1
      %p106 = por %p104, %p105
      %p107 = scmp.ne.s32.totalorder %s98, %s99
      %p108 = scmp.eq.s32.totalorder %s25, 0
      %p109 = por %p107, %p108
      %p110 = scmp.ne.s32.totalorder %s98, %s99
      %p111 = scmp.eq.s32.totalorder %s26, 1
      %p112 = por %p110, %p111
      %p114 = scmp.ne.s32.totalorder %s99, %s113
      %p115 = scmp.eq.s32.totalorder %s26, 0
      %p116 = por %p114, %p115
      %s118 = sadd.s32 %s117, 1
      %p121 = scmp.eq.s32.totalorder %s20, 1
      %p122 = scmp.ne.s32.totalorder %s117, %s119
      %p123 = scmp.eq.s32.totalorder %s20, 0
      %p124 = por %p122, %p123
      %p125 = scmp.ne.s32.totalorder %s117, %s119
      %p126 = scmp.eq.s32.totalorder %s25, 1
      %p127 = por %p125, %p126
      %p128 = scmp.ne.s32.totalorder %s119, %s120
      %p129 = scmp.eq.s32.totalorder %s25, 0
      %p130 = por %p128, %p129
      %p131 = scmp.ne.s32.totalorder %s119, %s120
      %p132 = scmp.eq.s32.totalorder %s26, 1
      %p133 = por %p131, %p132
      %p135 = scmp.ne.s32.totalorder %s120, %s134
      %p136 = scmp.eq.s32.totalorder %s26, 0
      %p137 = por %p135, %p136
      %s139 = sadd.s32 %s138, 1
      %p142 = scmp.eq.s32.totalorder %s20, 1
      %p143 = scmp.ne.s32.totalorder %s138, %s140
      %p144 = scmp.eq.s32.totalorder %s20, 0
      %p145 = por %p143, %p144
      %p146 = scmp.ne.s32.totalorder %s138, %s140
      %p147 = scmp.eq.s32.totalorder %s25, 1
      %p148 = por %p146, %p147
      %p149 = scmp.ne.s32.totalorder %s140, %s141
      %p150 = scmp.eq.s32.totalorder %s25, 0
      %p151 = por %p149, %p150
      %p152 = scmp.ne.s32.totalorder %s140, %s141
      %p153 = scmp.eq.s32.totalorder %s26, 1
      %p154 = por %p152, %p153
      %p156 = scmp.ne.s32.totalorder %s141, %s155
      %p157 = scmp.eq.s32.totalorder %s26, 0
      %p158 = por %p156, %p157
      %s160 = sadd.s32 %s159, 1
      %p163 = scmp.eq.s32.totalorder %s20, 1
      %p164 = scmp.ne.s32.totalorder %s159, %s161
      %p165 = scmp.eq.s32.totalorder %s20, 0
      %p166 = por %p164, %p165
      %p167 = scmp.ne.s32.totalorder %s159, %s161
      %p168 = scmp.eq.s32.totalorder %s25, 1
      %p169 = por %p167, %p168
      %p170 = scmp.ne.s32.totalorder %s161, %s162
      %p171 = scmp.eq.s32.totalorder %s25, 0
      %p172 = por %p170, %p171
      %p173 = scmp.ne.s32.totalorder %s161, %s162
      %p174 = scmp.eq.s32.totalorder %s26, 1
      %p175 = por %p173, %p174
      %p177 = scmp.ne.s32.totalorder %s162, %s176
      %p178 = scmp.eq.s32.totalorder %s26, 0
      %p179 = por %p177, %p178
      %s181 = sadd.s32 %s180, 1
      %p184 = scmp.eq.s32.totalorder %s20, 1
      %p185 = scmp.ne.s32.totalorder %s180, %s182
      %p186 = scmp.eq.s32.totalorder %s20, 0
      %p187 = por %p185, %p186
      %p188 = scmp.ne.s32.totalorder %s180, %s182
      %p189 = scmp.eq.s32.totalorder %s25, 1
      %p190 = por %p188, %p189
      %p191 = scmp.ne.s32.totalorder %s182, %s183
      %p192 = scmp.eq.s32.totalorder %s25, 0
      %p193 = por %p191, %p192
      %p194 = scmp.ne.s32.totalorder %s182, %s183
      %p195 = scmp.eq.s32.totalorder %s26, 1
      %p196 = por %p194, %p195
      %p198 = scmp.ne.s32.totalorder %s183, %s197
      %p199 = scmp.eq.s32.totalorder %s26, 0
      %p200 = por %p198, %p199
      %s202 = sadd.s32 %s201, 1
      %p205 = scmp.eq.s32.totalorder %s20, 1
      %p206 = scmp.ne.s32.totalorder %s201, %s203
      %p207 = scmp.eq.s32.totalorder %s20, 0
      %p208 = por %p206, %p207
      %p209 = scmp.ne.s32.totalorder %s201, %s203
      %p210 = scmp.eq.s32.totalorder %s25, 1
      %p211 = por %p209, %p210
      %p212 = scmp.ne.s32.totalorder %s203, %s204
      %p213 = scmp.eq.s32.totalorder %s25, 0
      %p214 = por %p212, %p213
      %p215 = scmp.ne.s32.totalorder %s203, %s204
      %p216 = scmp.eq.s32.totalorder %s26, 1
      %p217 = por %p215, %p216
      %p219 = scmp.ne.s32.totalorder %s204, %s218
      %p220 = scmp.eq.s32.totalorder %s26, 0
      %p221 = por %p219, %p220
      %s223 = sadd.s32 %s222, 1
      %p226 = scmp.eq.s32.totalorder %s20, 1
      %p227 = scmp.ne.s32.totalorder %s222, %s224
      %p228 = scmp.eq.s32.totalorder %s20, 0
      %p229 = por %p227, %p228
      %p230 = scmp.ne.s32.totalorder %s222, %s224
      %p231 = scmp.eq.s32.totalorder %s25, 1
      %p232 = por %p230, %p231
      %p233 = scmp.ne.s32.totalorder %s224, %s225
      %p234 = scmp.eq.s32.totalorder %s25, 0
      %p235 = por %p233, %p234
      %p236 = scmp.ne.s32.totalorder %s224, %s225
      %p237 = scmp.eq.s32.totalorder %s26, 1
      %p238 = por %p236, %p237
      %p240 = scmp.ne.s32.totalorder %s225, %s239
      %p241 = scmp.eq.s32.totalorder %s26, 0
      %p242 = por %p240, %p241
      %s244 = sadd.s32 %s243, 1
      %p247 = scmp.eq.s32.totalorder %s20, 1
      %p248 = scmp.ne.s32.totalorder %s243, %s245
      %p249 = scmp.eq.s32.totalorder %s20, 0
      %p250 = por %p248, %p249
      %p251 = scmp.ne.s32.totalorder %s243, %s245
      %p252 = scmp.eq.s32.totalorder %s25, 1
      %p253 = por %p251, %p252
      %p254 = scmp.ne.s32.totalorder %s245, %s246
      %p255 = scmp.eq.s32.totalorder %s25, 0
      %p256 = por %p254, %p255
      %p257 = scmp.ne.s32.totalorder %s245, %s246
      %p258 = scmp.eq.s32.totalorder %s26, 1
      %p259 = por %p257, %p258
      %p261 = scmp.ne.s32.totalorder %s246, %s260
      %p262 = scmp.eq.s32.totalorder %s26, 0
      %p263 = por %p261, %p262
      %s265 = sadd.s32 %s264, 1
      %p268 = scmp.eq.s32.totalorder %s20, 1
      %p269 = scmp.ne.s32.totalorder %s264, %s266
      %p270 = scmp.eq.s32.totalorder %s20, 0
      %p271 = por %p269, %p270
      %p272 = scmp.ne.s32.totalorder %s264, %s266
      %p273 = scmp.eq.s32.totalorder %s25, 1
      %p274 = por %p272, %p273
      %p275 = scmp.ne.s32.totalorder %s266, %s267
      %p276 = scmp.eq.s32.totalorder %s25, 0
      %p277 = por %p275, %p276
      %p278 = scmp.ne.s32.totalorder %s266, %s267
      %p279 = scmp.eq.s32.totalorder %s26, 1
      %p280 = por %p278, %p279
      %p282 = scmp.ne.s32.totalorder %s267, %s281
      %p283 = scmp.eq.s32.totalorder %s26, 0
      %p284 = por %p282, %p283
      %s286 = sadd.s32 %s285, 1
      %p289 = scmp.eq.s32.totalorder %s20, 1
      %p290 = scmp.ne.s32.totalorder %s285, %s287
      %p291 = scmp.eq.s32.totalorder %s20, 0
      %p292 = por %p290, %p291
      %p293 = scmp.ne.s32.totalorder %s285, %s287
      %p294 = scmp.eq.s32.totalorder %s25, 1
      %p295 = por %p293, %p294
      %p296 = scmp.ne.s32.totalorder %s287, %s288
      %p297 = scmp.eq.s32.totalorder %s25, 0
      %p298 = por %p296, %p297
      %p299 = scmp.ne.s32.totalorder %s287, %s288
      %p300 = scmp.eq.s32.totalorder %s26, 1
      %p301 = por %p299, %p300
      %p303 = scmp.ne.s32.totalorder %s288, %s302
      %p304 = scmp.eq.s32.totalorder %s26, 0
      %p305 = por %p303, %p304
      %s306 = ssub.s32 %s20, %s27
      %p307 = scmp.eq.s32.totalorder %s306, 0
      %s309 = sadd.s32 %s308, 1
      %s310 = scalar_select %p307, %s308, %s309
      %p313 = pneg %p307
      %p314 = scmp.eq.s32.totalorder %s20, 1
      %p315 = por %p313, %p314
      %p316 = scmp.ne.s32.totalorder %s308, %s311
      %p317 = scmp.eq.s32.totalorder %s20, 0
      %p318 = por %p316, %p317
      %p319 = scmp.ne.s32.totalorder %s308, %s311
      %p320 = scmp.eq.s32.totalorder %s25, 1
      %p321 = por %p319, %p320
      %p322 = scmp.ne.s32.totalorder %s311, %s312
      %p323 = scmp.eq.s32.totalorder %s25, 0
      %p324 = por %p322, %p323
      %p325 = scmp.ne.s32.totalorder %s311, %s312
      %p326 = scmp.eq.s32.totalorder %s26, 1
      %p327 = por %p325, %p326
      %p329 = scmp.ne.s32.totalorder %s312, %s328
      %p330 = scmp.eq.s32.totalorder %s26, 0
      %p331 = por %p329, %p330
      %p332 = scmp.le.s32.totalorder 1, %s20
      %p333 = scmp.lt.s32.totalorder %s20, 3
      %p334 = pnand %p332, %p333
      %p335 = pneg %p334
      // Predicated region
      $region9: #{double_conv_forward.1} parent=5 // pred_check
        _
      $region10: #{double_conv_forward.1} parent=5 // pred_check_branch
        %337 = sbr.rel (%p334) target = $region12
      $region11: #{double_conv_forward.1} parent=5 // pred_region
        %s338 = ssub.s32 %s20, 1
        // Predicated region
        $region13: #{double_conv_forward.1} parent=11 // pred_check
          %p339 = pneg %p67
        $region14: #{double_conv_forward.1} parent=11 // pred_check_branch
          %341 = sbr.rel (%p339) target = $region16
        $region15: #{double_conv_forward.1} parent=11 // pred_region
          _
        $region16: #{double_conv_forward.1} parent=11 // pred_fallthru
          _
        // Predicated region
        $region17: #{double_conv_forward.1} parent=11 // pred_check
          %p342 = pneg %p88
        $region18: #{double_conv_forward.1} parent=11 // pred_check_branch
          %344 = sbr.rel (%p342) target = $region20
        $region19: #{double_conv_forward.1} parent=11 // pred_region
          _
        $region20: #{double_conv_forward.1} parent=11 // pred_fallthru
          _
        // Predicated region
        $region21: #{double_conv_forward.1} parent=11 // pred_check
          %p345 = pneg %p109
        $region22: #{double_conv_forward.1} parent=11 // pred_check_branch
          %347 = sbr.rel (%p345) target = $region24
        $region23: #{double_conv_forward.1} parent=11 // pred_region
          _
        $region24: #{double_conv_forward.1} parent=11 // pred_fallthru
          _
        // Predicated region
        $region25: #{double_conv_forward.1} parent=11 // pred_check
          %p348 = pneg %p130
        $region26: #{double_conv_forward.1} parent=11 // pred_check_branch
          %350 = sbr.rel (%p348) target = $region28
        $region27: #{double_conv_forward.1} parent=11 // pred_region
          _
        $region28: #{double_conv_forward.1} parent=11 // pred_fallthru
          _
        // Predicated region
        $region29: #{double_conv_forward.1} parent=11 // pred_check
          %p351 = pneg %p151
        $region30: #{double_conv_forward.1} parent=11 // pred_check_branch
          %353 = sbr.rel (%p351) target = $region32
        $region31: #{double_conv_forward.1} parent=11 // pred_region
          _
        $region32: #{double_conv_forward.1} parent=11 // pred_fallthru
          _
        // Predicated region
        $region33: #{double_conv_forward.1} parent=11 // pred_check
          %p354 = pneg %p172
        $region34: #{double_conv_forward.1} parent=11 // pred_check_branch
          %356 = sbr.rel (%p354) target = $region36
        $region35: #{double_conv_forward.1} parent=11 // pred_region
          _
        $region36: #{double_conv_forward.1} parent=11 // pred_fallthru
          _
        // Predicated region
        $region37: #{double_conv_forward.1} parent=11 // pred_check
          %p357 = pneg %p193
        $region38: #{double_conv_forward.1} parent=11 // pred_check_branch
          %359 = sbr.rel (%p357) target = $region40
        $region39: #{double_conv_forward.1} parent=11 // pred_region
          _
        $region40: #{double_conv_forward.1} parent=11 // pred_fallthru
          _
        // Predicated region
        $region41: #{double_conv_forward.1} parent=11 // pred_check
          %p360 = pneg %p214
        $region42: #{double_conv_forward.1} parent=11 // pred_check_branch
          %362 = sbr.rel (%p360) target = $region44
        $region43: #{double_conv_forward.1} parent=11 // pred_region
          _
        $region44: #{double_conv_forward.1} parent=11 // pred_fallthru
          _
        // Predicated region
        $region45: #{double_conv_forward.1} parent=11 // pred_check
          %p363 = pneg %p235
        $region46: #{double_conv_forward.1} parent=11 // pred_check_branch
          %365 = sbr.rel (%p363) target = $region48
        $region47: #{double_conv_forward.1} parent=11 // pred_region
          _
        $region48: #{double_conv_forward.1} parent=11 // pred_fallthru
          _
        // Predicated region
        $region49: #{double_conv_forward.1} parent=11 // pred_check
          %p366 = pneg %p256
        $region50: #{double_conv_forward.1} parent=11 // pred_check_branch
          %368 = sbr.rel (%p366) target = $region52
        $region51: #{double_conv_forward.1} parent=11 // pred_region
          _
        $region52: #{double_conv_forward.1} parent=11 // pred_fallthru
          _
        // Predicated region
        $region53: #{double_conv_forward.1} parent=11 // pred_check
          %p369 = pneg %p277
        $region54: #{double_conv_forward.1} parent=11 // pred_check_branch
          %371 = sbr.rel (%p369) target = $region56
        $region55: #{double_conv_forward.1} parent=11 // pred_region
          _
        $region56: #{double_conv_forward.1} parent=11 // pred_fallthru
          _
        // Predicated region
        $region57: #{double_conv_forward.1} parent=11 // pred_check
          %p372 = pneg %p298
        $region58: #{double_conv_forward.1} parent=11 // pred_check_branch
          %374 = sbr.rel (%p372) target = $region60
        $region59: #{double_conv_forward.1} parent=11 // pred_region
          %s376 = ssub.s32 16, 16
          %377 = vsyncadd [#allocation5], %s376
          %s379 = sshll.u32 %s12, 4
          %s380 = int_to_ptr.vmem [resolvable:$true] %s379
          %382 = dma.vmem_to_smem %s380, 16, [#allocation4], [#allocation5]
        $region60: #{double_conv_forward.1} parent=11 // pred_fallthru
          _
      $region12: #{double_conv_forward.1} parent=5 // pred_fallthru
        _
      %p383 = scmp.lt.s32.totalorder %s20, 2
      // Predicated region
      $region61: #{double_conv_forward.1} parent=5 // pred_check
        %p384 = pneg %p383
      $region62: #{double_conv_forward.1} parent=5 // pred_check_branch
        %386 = sbr.rel (%p384) target = $region64
      $region63: #{double_conv_forward.1} parent=5 // pred_region
        // Predicated region
        $region65: #{double_conv_forward.1} parent=63 // pred_check
          %p387 = pneg %p40
        $region66: #{double_conv_forward.1} parent=63 // pred_check_branch
          %389 = sbr.rel (%p387) target = $region68
        $region67: #{double_conv_forward.1} parent=63 // pred_region
          %p390 = scmp.lt.s32.totalorder %s20, 1
          %s391 = scalar_select %p390, %s20, 1
          %s392 = smul.addr %s391, 2
          %s393 = smul.addr %s392, 8
          %s394 = scalar_lea.vmem %s0, %s393
        $region68: #{double_conv_forward.1} parent=63 // pred_fallthru
          _
      $region64: #{double_conv_forward.1} parent=5 // pred_fallthru
        _
      %p395 = scmp.le.s32.totalorder 1, %s20
      %p396 = scmp.lt.s32.totalorder %s20, 3
      %p397 = pnand %p395, %p396
      %p398 = pneg %p397
      // Predicated region
      $region69: #{double_conv_forward.1} parent=5 // pred_check
        _
      $region70: #{double_conv_forward.1} parent=5 // pred_check_branch
        %400 = sbr.rel (%p397) target = $region72
      $region71: #{double_conv_forward.1} parent=5 // pred_region
        %s401 = ssub.s32 %s20, 1
        // Predicated region
        $region73: #{double_conv_forward.1} parent=71 // pred_check
          %p402 = pneg %p298
        $region74: #{double_conv_forward.1} parent=71 // pred_check_branch
          %404 = sbr.rel (%p402) target = $region76
        $region75: #{double_conv_forward.1} parent=71 // pred_region
          %405 = dma.done [#allocation5], 16
        $region76: #{double_conv_forward.1} parent=71 // pred_fallthru
          _
        %406 = sfence
        %p407 = scmp.lt.s32.totalorder %s25, 1
        %s408 = scalar_select %p407, %s25, 1
        %s409 = smul.addr %s408, 2
        %s410 = smul.addr %s409, 8
        %s411 = scalar_lea.vmem %s0, %s410
        %p412 = pneg %p46
        %p413 = pneg %p43
        %p414 = pneg %p67
        %p415 = pneg %p64
        %p416 = pneg %p88
        %p417 = pneg %p85
        %p418 = pneg %p109
        %p419 = pneg %p106
        %p420 = pneg %p130
        %p421 = pneg %p127
        %p422 = pneg %p151
        %p423 = pneg %p148
        %p424 = pneg %p172
        %p425 = pneg %p169
        %p426 = pneg %p193
        %p427 = pneg %p190
        %p428 = pneg %p214
        %p429 = pneg %p211
        %p430 = pneg %p235
        %p431 = pneg %p232
        %p432 = pneg %p256
        %p433 = pneg %p253
        %p434 = pneg %p277
        %p435 = pneg %p274
        %p436 = pneg %p298
        %p437 = pneg %p295
        %p438 = pneg %p324
        %p439 = pneg %p321
        %p440 = scmp.lt.s32.totalorder %s25, 1
        %s441 = scalar_select %p440, %s25, 1
        %s442 = smul.addr %s441, 2
        %s443 = smul.addr %s442, 8
        %s444 = scalar_lea.vmem %s13, %s443
        %p445 = scmp.lt.s32.totalorder %s25, 1
        %s446 = scalar_select %p445, %s25, 1
        %s447 = smul.addr %s446, 2
        %s448 = smul.addr %s447, 8
        %s449 = scalar_lea.vmem %s0, %s448
        %p450 = scmp.lt.s32.totalorder %s25, 1
        %s451 = scalar_select %p450, %s25, 1
        %s452 = smul.addr %s451, 2
        %s453 = smul.addr %s452, 8
        %s454 = scalar_lea.vmem %s13, %s453
        %v456 = vld [vmem:[%s11] sm:$0xf]
        %v457 = vld [vmem:[%s11 + $0x4] sm:$0xf]
        %vm458 = vcmask 588800
        %459 = vst.msk [vmem:[#allocation2] sm:$0xff] %vm458, 0.0
        %460 = vst.msk [vmem:[#allocation2 + $0x8] sm:$0xff] %vm458, 0.0
        %vm461 = vcmask 582656
        %462 = vst.msk [vmem:[#allocation2 + $0x10] sm:$0x3] %vm461, 0.0
        %v463 = vld [vmem:[%s449] sm:$0xff]
        %v464 = vld [vmem:[%s449 + $0x8] sm:$0xff]
        %vm465 = vcmask 523264
        %466 = vst.msk [vmem:[#allocation2 + $0x1] sm:$0xff] %vm465, %v463
        %467 = vst.msk [vmem:[#allocation2 + $0x9] sm:$0xff] %vm465, %v464
        %s468 = sld [smem:[#allocation4]]
        %v469 = vld [vmem:[#allocation2] sm:$0xff]
        %v470 = vld [vmem:[#allocation2 + $0x8] sm:$0xff]
        %v471 = vld [vmem:[#allocation2 + $0x10] sm:$0x3]
        %v472 = vpack.c.bf16 %v470, %v469
        %v473 = vpack.c.bf16 %v471, %v471
        %v474 = vld [vmem:[%s1] sm:$0xf]
        %v475 = vld [vmem:[%s1 + $0x4] sm:$0xf]
        %v476 = vld [vmem:[%s1 + $0x8] sm:$0xf]
        %v477 = vld [vmem:[%s1 + $0xc] sm:$0xf]
        %v478 = vld [vmem:[%s1 + $0x10] sm:$0xf]
        %v479 = vld [vmem:[%s1 + $0x14] sm:$0xf]
        %v480 = vld [vmem:[%s1 + $0x18] sm:$0xf]
        %v481 = vld [vmem:[%s1 + $0x1c] sm:$0xf]
        %v482 = vld [vmem:[%s2] sm:$0x1]
        %v484 = vlaneseq
        %v485 = vshrl.u32 %v484, 7
        %v486 = vsub.s32 0, %v485
        %v487 = vrot.slane %v482, %v486
        %vm489 = vsmask.f32 7424
        %v491 = vshrl.u32 %v472, 16
        %v493 = vshll.u32 %v472, 16
        %v495 = vrot.slane %v493, 1
        %v496 = vor.u32 %v491, %v495
        %v498 = vshll.u32 %v473, 16
        %v500 = vrot.slane %v498, 1
        %v501 = vsel %vm489, %v496, %v500
        %v510 = vunpack.c.l.b16 %v474
        %v511 = vunpack.c.l.b16 %v475
        %v512 = vunpack.c.l.b16 %v476
        %v513 = vunpack.c.l.b16 %v477
        %v514 = vunpack.c.l.b16 %v478
        %v515 = vunpack.c.l.b16 %v479
        %v516 = vunpack.c.l.b16 %v480
        %v517 = vunpack.c.l.b16 %v481
        %v518 = vpack.c.b16 %v511, %v510
        %v519 = vpack.c.b16 %v513, %v512
        %v520 = vpack.c.b16 %v515, %v514
        %v521 = vpack.c.b16 %v517, %v516
        %v527 = vsel %vm465, %v501, 0
        %529 = vmatprep.subr.bf16.mxu0 0
        %530 = vmatpush1.bf16.msra.mxu0 %v518
        %531 = vmatprep.subr.bf16.mxu0 0
        %532 = vmatpush1.bf16.msra.mxu0 %v519
        %533 = vmatprep.subr.bf16.mxu0 0
        %534 = vmatpush1.bf16.msra.mxu0 %v520
        %535 = vmatprep.subr.bf16.mxu0 0
        %536 = vmatpush1.bf16.msra.mxu0 %v521
        %537 = vmatprep.subr.bf16.mxu0 0
        %538 = vmatpush1.bf16.msra.mxu0 0
        %539 = vmatprep.subr.bf16.mxu0 0
        %540 = vmatpush1.bf16.msra.mxu0 0
        %541 = vmatprep.subr.bf16.mxu0 0
        %542 = vmatpush1.bf16.msra.mxu0 0
        %543 = vmatprep.subr.bf16.mxu0 0
        %544 = vmatpush1.bf16.msra.mxu0 0
        %545 = vmatprep.subr.bf16.mxu0 0
        %546 = vmatpush1.bf16.msra.mxu0 0
        %547 = vmatprep.subr.bf16.mxu0 0
        %548 = vmatpush1.bf16.msra.mxu0 0
        %549 = vmatprep.subr.bf16.mxu0 0
        %550 = vmatpush1.bf16.msra.mxu0 0
        %551 = vmatprep.subr.bf16.mxu0 0
        %552 = vmatpush1.bf16.msra.mxu0 0
        %553 = vmatprep.subr.bf16.mxu0 0
        %554 = vmatpush1.bf16.msra.mxu0 0
        %555 = vmatprep.subr.bf16.mxu0 0
        %556 = vmatpush1.bf16.msra.mxu0 0
        %557 = vmatprep.subr.bf16.mxu0 0
        %558 = vmatpush1.bf16.msra.mxu0 0
        %559 = vmatprep.subr.bf16.mxu0 0
        %560 = vmatpush1.bf16.msra.mxu0 0
        %561 = vmatprep.mubr.bf16.mxu0 0
        %562 = vmatmul.mubr.bf16.gmra.mrb[0].mxu0 %v527
        %v563 = vpop.f32.mrb[0].mxu0
        %v564 = vadd.f32 %v487, %v563
        %v565 = vpop.f32.mrb[0].mxu0
        %v566 = vpop.f32.mrb[0].mxu0
        %v567 = vadd.f32 %v487, %v566
        %v568 = vpop.f32.mrb[0].mxu0
        %569 = vdwg.mxu0
        %v570 = vmax.f32 %v564, 0.0
        %v571 = vmax.f32 %v567, 0.0
        %v572 = vld [vmem:[%s3] sm:$0xf]
        %v573 = vld [vmem:[%s3 + $0x4] sm:$0xf]
        %v574 = vld [vmem:[%s3 + $0x8] sm:$0xf]
        %v575 = vld [vmem:[%s3 + $0xc] sm:$0xf]
        %v576 = vld [vmem:[%s3 + $0x10] sm:$0xf]
        %v577 = vld [vmem:[%s3 + $0x14] sm:$0xf]
        %v578 = vld [vmem:[%s3 + $0x18] sm:$0xf]
        %v579 = vld [vmem:[%s3 + $0x1c] sm:$0xf]
        %v580 = vld [vmem:[%s3 + $0x20] sm:$0xf]
        %s581 = scalar_lea.vmem %s3, 36
        %v582 = vld [vmem:[%s581] sm:$0xf]
        %v583 = vld [vmem:[%s581 + $0x4] sm:$0xf]
        %v584 = vld [vmem:[%s581 + $0x8] sm:$0xf]
        %v585 = vld [vmem:[%s581 + $0xc] sm:$0xf]
        %v586 = vld [vmem:[%s581 + $0x10] sm:$0xf]
        %v587 = vld [vmem:[%s581 + $0x14] sm:$0xf]
        %v588 = vld [vmem:[%s581 + $0x18] sm:$0xf]
        %v589 = vld [vmem:[%s581 + $0x1c] sm:$0xf]
        %v590 = vld [vmem:[%s581 + $0x20] sm:$0xf]
        %v600 = vunpack.c.l.b16 %v582
        %v601 = vunpack.c.l.b16 %v583
        %v602 = vunpack.c.l.b16 %v584
        %v603 = vunpack.c.l.b16 %v585
        %v604 = vunpack.c.l.b16 %v586
        %v605 = vunpack.c.l.b16 %v587
        %v606 = vunpack.c.l.b16 %v588
        %v607 = vunpack.c.l.b16 %v589
        %v608 = vunpack.c.l.b16 %v590
        %v609 = vpack.c.b16 %v601, %v600
        %v610 = vpack.c.b16 %v603, %v602
        %v611 = vpack.c.b16 %v605, %v604
        %v612 = vpack.c.b16 %v607, %v606
        %v613 = vpack.c.b16 %v608, %v608
        %v618 = vsel %vm458, %v501, 0
        %vm620 = vcmask 1043456
        %v622 = vsel %vm620, %v613, 0
        %624 = vmatprep.subr.bf16.mxu0 0
        %625 = vmatpush1.bf16.msra.mxu0 %v609
        %626 = vmatprep.subr.bf16.mxu0 0
        %627 = vmatpush1.bf16.msra.mxu0 %v610
        %628 = vmatprep.subr.bf16.mxu0 0
        %629 = vmatpush1.bf16.msra.mxu0 %v611
        %630 = vmatprep.subr.bf16.mxu0 0
        %631 = vmatpush1.bf16.msra.mxu0 %v612
        %632 = vmatprep.subr.bf16.mxu0 0
        %633 = vmatpush1.bf16.msra.mxu0 %v622
        %634 = vmatprep.subr.bf16.mxu0 0
        %635 = vmatpush1.bf16.msra.mxu0 0
        %636 = vmatprep.subr.bf16.mxu0 0
        %637 = vmatpush1.bf16.msra.mxu0 0
        %638 = vmatprep.subr.bf16.mxu0 0
        %639 = vmatpush1.bf16.msra.mxu0 0
        %640 = vmatprep.subr.bf16.mxu0 0
        %641 = vmatpush1.bf16.msra.mxu0 0
        %642 = vmatprep.subr.bf16.mxu0 0
        %643 = vmatpush1.bf16.msra.mxu0 0
        %644 = vmatprep.subr.bf16.mxu0 0
        %645 = vmatpush1.bf16.msra.mxu0 0
        %646 = vmatprep.subr.bf16.mxu0 0
        %647 = vmatpush1.bf16.msra.mxu0 0
        %648 = vmatprep.subr.bf16.mxu0 0
        %649 = vmatpush1.bf16.msra.mxu0 0
        %650 = vmatprep.subr.bf16.mxu0 0
        %651 = vmatpush1.bf16.msra.mxu0 0
        %652 = vmatprep.subr.bf16.mxu0 0
        %653 = vmatpush1.bf16.msra.mxu0 0
        %654 = vmatprep.subr.bf16.mxu0 0
        %655 = vmatpush1.bf16.msra.mxu0 0
        %656 = vmatprep.mubr.bf16.mxu0 0
        %657 = vmatmul.mubr.bf16.gmra.mrb[0].mxu0 %v618
        %v658 = vpop.f32.mrb[0].mxu0
        %v659 = vadd.f32 0.0, %v658
        %v660 = vpop.f32.mrb[0].mxu0
        %v661 = vpop.f32.mrb[0].mxu0
        %v662 = vadd.f32 0.0, %v661
        %v663 = vpop.f32.mrb[0].mxu0
        %664 = vdwg.mxu0
        %v674 = vunpack.c.l.b16 %v572
        %v675 = vunpack.c.l.b16 %v573
        %v676 = vunpack.c.l.b16 %v574
        %v677 = vunpack.c.l.b16 %v575
        %v678 = vunpack.c.l.b16 %v576
        %v679 = vunpack.c.l.b16 %v577
        %v680 = vunpack.c.l.b16 %v578
        %v681 = vunpack.c.l.b16 %v579
        %v682 = vunpack.c.l.b16 %v580
        %v683 = vpack.c.b16 %v675, %v674
        %v684 = vpack.c.b16 %v677, %v676
        %v685 = vpack.c.b16 %v679, %v678
        %v686 = vpack.c.b16 %v681, %v680
        %v687 = vpack.c.b16 %v682, %v682
        %v692 = vsel %vm458, %v472, 0
        %v695 = vsel %vm620, %v687, 0
        %697 = vmatprep.subr.bf16.mxu0 0
        %698 = vmatpush1.bf16.msra.mxu0 %v683
        %699 = vmatprep.subr.bf16.mxu0 0
        %700 = vmatpush1.bf16.msra.mxu0 %v684
        %701 = vmatprep.subr.bf16.mxu0 0
        %702 = vmatpush1.bf16.msra.mxu0 %v685
        %703 = vmatprep.subr.bf16.mxu0 0
        %704 = vmatpush1.bf16.msra.mxu0 %v686
        %705 = vmatprep.subr.bf16.mxu0 0
        %706 = vmatpush1.bf16.msra.mxu0 %v695
        %707 = vmatprep.subr.bf16.mxu0 0
        %708 = vmatpush1.bf16.msra.mxu0 0
        %709 = vmatprep.subr.bf16.mxu0 0
        %710 = vmatpush1.bf16.msra.mxu0 0
        %711 = vmatprep.subr.bf16.mxu0 0
        %712 = vmatpush1.bf16.msra.mxu0 0
        %713 = vmatprep.subr.bf16.mxu0 0
        %714 = vmatpush1.bf16.msra.mxu0 0
        %715 = vmatprep.subr.bf16.mxu0 0
        %716 = vmatpush1.bf16.msra.mxu0 0
        %717 = vmatprep.subr.bf16.mxu0 0
        %718 = vmatpush1.bf16.msra.mxu0 0
        %719 = vmatprep.subr.bf16.mxu0 0
        %720 = vmatpush1.bf16.msra.mxu0 0
        %721 = vmatprep.subr.bf16.mxu0 0
        %722 = vmatpush1.bf16.msra.mxu0 0
        %723 = vmatprep.subr.bf16.mxu0 0
        %724 = vmatpush1.bf16.msra.mxu0 0
        %725 = vmatprep.subr.bf16.mxu0 0
        %726 = vmatpush1.bf16.msra.mxu0 0
        %727 = vmatprep.subr.bf16.mxu0 0
        %728 = vmatpush1.bf16.msra.mxu0 0
        %729 = vmatprep.mubr.bf16.mxu0 0
        %730 = vmatmul.mubr.bf16.gmra.mrb[0].mxu0 %v692
        %v731 = vpop.f32.mrb[0].mxu0
        %v732 = vadd.f32 %v659, %v731
        %v733 = vpop.f32.mrb[0].mxu0
        %v734 = vpop.f32.mrb[0].mxu0
        %v735 = vadd.f32 %v662, %v734
        %v736 = vpop.f32.mrb[0].mxu0
        %737 = vdwg.mxu0
        %s738 = scalar_lea.vmem %s3, 72
        %v739 = vld [vmem:[%s738] sm:$0xf]
        %v740 = vld [vmem:[%s738 + $0x4] sm:$0xf]
        %v741 = vld [vmem:[%s738 + $0x8] sm:$0xf]
        %v742 = vld [vmem:[%s738 + $0xc] sm:$0xf]
        %v743 = vld [vmem:[%s738 + $0x10] sm:$0xf]
        %v744 = vld [vmem:[%s738 + $0x14] sm:$0xf]
        %v745 = vld [vmem:[%s738 + $0x18] sm:$0xf]
        %v746 = vld [vmem:[%s738 + $0x1c] sm:$0xf]
        %v747 = vld [vmem:[%s738 + $0x20] sm:$0xf]
        %vm750 = vcmask 1046528
        %v751 = vrot.slane %v472, 1
        %v752 = vrot.slane %v473, 1
        %v753 = vsel %vm750, %v751, %v752
        %v763 = vunpack.c.l.b16 %v739
        %v764 = vunpack.c.l.b16 %v740
        %v765 = vunpack.c.l.b16 %v741
        %v766 = vunpack.c.l.b16 %v742
        %v767 = vunpack.c.l.b16 %v743
        %v768 = vunpack.c.l.b16 %v744
        %v769 = vunpack.c.l.b16 %v745
        %v770 = vunpack.c.l.b16 %v746
        %v771 = vunpack.c.l.b16 %v747
        %v772 = vpack.c.b16 %v764, %v763
        %v773 = vpack.c.b16 %v766, %v765
        %v774 = vpack.c.b16 %v768, %v767
        %v775 = vpack.c.b16 %v770, %v769
        %v776 = vpack.c.b16 %v771, %v771
        %v782 = vsel %vm458, %v753, 0
        %v785 = vsel %vm620, %v776, 0
        %787 = vmatprep.subr.bf16.mxu0 0
        %788 = vmatpush1.bf16.msra.mxu0 %v772
        %789 = vmatprep.subr.bf16.mxu0 0
        %790 = vmatpush1.bf16.msra.mxu0 %v773
        %791 = vmatprep.subr.bf16.mxu0 0
        %792 = vmatpush1.bf16.msra.mxu0 %v774
        %793 = vmatprep.subr.bf16.mxu0 0
        %794 = vmatpush1.bf16.msra.mxu0 %v775
        %795 = vmatprep.subr.bf16.mxu0 0
        %796 = vmatpush1.bf16.msra.mxu0 %v785
        %797 = vmatprep.subr.bf16.mxu0 0
        %798 = vmatpush1.bf16.msra.mxu0 0
        %799 = vmatprep.subr.bf16.mxu0 0
        %800 = vmatpush1.bf16.msra.mxu0 0
        %801 = vmatprep.subr.bf16.mxu0 0
        %802 = vmatpush1.bf16.msra.mxu0 0
        %803 = vmatprep.subr.bf16.mxu0 0
        %804 = vmatpush1.bf16.msra.mxu0 0
        %805 = vmatprep.subr.bf16.mxu0 0
        %806 = vmatpush1.bf16.msra.mxu0 0
        %807 = vmatprep.subr.bf16.mxu0 0
        %808 = vmatpush1.bf16.msra.mxu0 0
        %809 = vmatprep.subr.bf16.mxu0 0
        %810 = vmatpush1.bf16.msra.mxu0 0
        %811 = vmatprep.subr.bf16.mxu0 0
        %812 = vmatpush1.bf16.msra.mxu0 0
        %813 = vmatprep.subr.bf16.mxu0 0
        %814 = vmatpush1.bf16.msra.mxu0 0
        %815 = vmatprep.subr.bf16.mxu0 0
        %816 = vmatpush1.bf16.msra.mxu0 0
        %817 = vmatprep.subr.bf16.mxu0 0
        %818 = vmatpush1.bf16.msra.mxu0 0
        %819 = vmatprep.mubr.bf16.mxu0 0
        %820 = vmatmul.mubr.bf16.gmra.mrb[0].mxu0 %v782
        %v821 = vpop.f32.mrb[0].mxu0
        %v822 = vadd.f32 0.0, %v821
        %v823 = vpop.f32.mrb[0].mxu0
        %v824 = vpop.f32.mrb[0].mxu0
        %v825 = vadd.f32 0.0, %v824
        %v826 = vpop.f32.mrb[0].mxu0
        %827 = vdwg.mxu0
        %v828 = vadd.f32 %v732, %v822
        %v829 = vadd.f32 %v735, %v825
        %v830 = vld [vmem:[%s4] sm:$0x1]
        %v832 = vlaneseq
        %v833 = vshrl.u32 %v832, 7
        %v834 = vsub.s32 0, %v833
        %v835 = vrot.slane %v830, %v834
        %v837 = vadd.f32 %v828, %v835
        %v838 = vadd.f32 %v829, %v835
        %v839 = vmax.f32 %v837, 0.0
        %v840 = vmax.f32 %v838, 0.0
        %843 = vrot.lane.b32.xlu0 %v570, 96
        %v844 = vpop.permute.xlu0 %843
        %845 = vrot.lane.b32.xlu0 %v571, 96
        %v846 = vpop.permute.xlu0 %845
        %v849 = vmul.f32 %v570, %v844
        %v850 = vmul.f32 %v571, %v846
        %v851 = vpack.c.bf16 %v850, %v849
        %v852 = vld [vmem:[%s5] sm:$0xf]
        %v853 = vld [vmem:[%s5 + $0x4] sm:$0xf]
        %v854 = vld [vmem:[%s5 + $0x8] sm:$0xf]
        %v855 = vld [vmem:[%s5 + $0xc] sm:$0xf]
        %v856 = vstv %s468
        %v861 = vunpack.c.l.b16 %v852
        %v862 = vunpack.c.l.b16 %v853
        %v863 = vunpack.c.l.b16 %v854
        %v864 = vunpack.c.l.b16 %v855
        %v865 = vpack.c.b16 %v862, %v861
        %v866 = vpack.c.b16 %v864, %v863
        %vm869 = vcmask 261120
        %v871 = vsel %vm869, %v851, 0
        %873 = vmatprep.subr.bf16.mxu0 0
        %874 = vmatpush1.bf16.msra.mxu0 %v865
        %875 = vmatprep.subr.bf16.mxu0 0
        %876 = vmatpush1.bf16.msra.mxu0 %v866
        %877 = vmatprep.subr.bf16.mxu0 0
        %878 = vmatpush1.bf16.msra.mxu0 0
        %879 = vmatprep.subr.bf16.mxu0 0
        %880 = vmatpush1.bf16.msra.mxu0 0
        %881 = vmatprep.subr.bf16.mxu0 0
        %882 = vmatpush1.bf16.msra.mxu0 0
        %883 = vmatprep.subr.bf16.mxu0 0
        %884 = vmatpush1.bf16.msra.mxu0 0
        %885 = vmatprep.subr.bf16.mxu0 0
        %886 = vmatpush1.bf16.msra.mxu0 0
        %887 = vmatprep.subr.bf16.mxu0 0
        %888 = vmatpush1.bf16.msra.mxu0 0
        %889 = vmatprep.subr.bf16.mxu0 0
        %890 = vmatpush1.bf16.msra.mxu0 0
        %891 = vmatprep.subr.bf16.mxu0 0
        %892 = vmatpush1.bf16.msra.mxu0 0
        %893 = vmatprep.subr.bf16.mxu0 0
        %894 = vmatpush1.bf16.msra.mxu0 0
        %895 = vmatprep.subr.bf16.mxu0 0
        %896 = vmatpush1.bf16.msra.mxu0 0
        %897 = vmatprep.subr.bf16.mxu0 0
        %898 = vmatpush1.bf16.msra.mxu0 0
        %899 = vmatprep.subr.bf16.mxu0 0
        %900 = vmatpush1.bf16.msra.mxu0 0
        %901 = vmatprep.subr.bf16.mxu0 0
        %902 = vmatpush1.bf16.msra.mxu0 0
        %903 = vmatprep.subr.bf16.mxu0 0
        %904 = vmatpush1.bf16.msra.mxu0 0
        %905 = vmatprep.mubr.bf16.mxu0 0
        %906 = vmatmul.mubr.bf16.gmra.mrb[0].mxu0 %v871
        %v907 = vpop.f32.mrb[0].mxu0
        %v908 = vadd.f32 %v856, %v907
        %v909 = vpop.f32.mrb[0].mxu0
        %v910 = vpop.f32.mrb[0].mxu0
        %v911 = vadd.f32 %v856, %v910
        %v912 = vpop.f32.mrb[0].mxu0
        %913 = vdwg.mxu0
        %v914 = vmax.f32 %v908, 0.0
        %v915 = vmax.f32 %v911, 0.0
        %v916 = vsub.f32 0.0, %v914
        %v917 = vsub.f32 0.0, %v915
        %v918 = vmul.f32 %v916, 1.442695
        %v919 = vpow.pop %v918
        %v920 = vmul.f32 %v917, 1.442695
        %v921 = vpow.pop %v920
        %v922 = vadd.f32 %v919, 1.0
        %v923 = vadd.f32 %v921, 1.0
        %v924 = vrcp.pop %v922
        %v925 = vmul.f32 1.0, %v924
        %v926 = vrcp.pop %v923
        %v927 = vmul.f32 1.0, %v926
        %v928 = vpack.c.bf16 %v927, %v925
        %v931 = vunpack.c.l.b16 %v456
        %v932 = vunpack.c.l.b16 %v457
        %v933 = vpack.c.b16 %v932, %v931
        %vm935 = vcmask 130048
        %v937 = vsel %vm935, %v928, 0
        %939 = vmatprep.subr.bf16.mxu0 0
        %940 = vmatpush1.bf16.msra.mxu0 %v933
        %941 = vmatprep.subr.bf16.mxu0 0
        %942 = vmatpush1.bf16.msra.mxu0 0
        %943 = vmatprep.subr.bf16.mxu0 0
        %944 = vmatpush1.bf16.msra.mxu0 0
        %945 = vmatprep.subr.bf16.mxu0 0
        %946 = vmatpush1.bf16.msra.mxu0 0
        %947 = vmatprep.subr.bf16.mxu0 0
        %948 = vmatpush1.bf16.msra.mxu0 0
        %949 = vmatprep.subr.bf16.mxu0 0
        %950 = vmatpush1.bf16.msra.mxu0 0
        %951 = vmatprep.subr.bf16.mxu0 0
        %952 = vmatpush1.bf16.msra.mxu0 0
        %953 = vmatprep.subr.bf16.mxu0 0
        %954 = vmatpush1.bf16.msra.mxu0 0
        %955 = vmatprep.subr.bf16.mxu0 0
        %956 = vmatpush1.bf16.msra.mxu0 0
        %957 = vmatprep.subr.bf16.mxu0 0
        %958 = vmatpush1.bf16.msra.mxu0 0
        %959 = vmatprep.subr.bf16.mxu0 0
        %960 = vmatpush1.bf16.msra.mxu0 0
        %961 = vmatprep.subr.bf16.mxu0 0
        %962 = vmatpush1.bf16.msra.mxu0 0
        %963 = vmatprep.subr.bf16.mxu0 0
        %964 = vmatpush1.bf16.msra.mxu0 0
        %965 = vmatprep.subr.bf16.mxu0 0
        %966 = vmatpush1.bf16.msra.mxu0 0
        %967 = vmatprep.subr.bf16.mxu0 0
        %968 = vmatpush1.bf16.msra.mxu0 0
        %969 = vmatprep.subr.bf16.mxu0 0
        %970 = vmatpush1.bf16.msra.mxu0 0
        %971 = vmatprep.mubr.bf16.mxu0 0
        %972 = vmatmul.mubr.bf16.gmra.mrb[0].mxu0 %v937
        %v973 = vpop.f32.mrb[0].mxu0
        %v974 = vadd.f32 0.0, %v973
        %v975 = vpop.f32.mrb[0].mxu0
        %v976 = vpop.f32.mrb[0].mxu0
        %v977 = vadd.f32 0.0, %v976
        %v978 = vpop.f32.mrb[0].mxu0
        %979 = vdwg.mxu0
        %v980 = vmul.f32 %v974, %v839
        %v981 = vmul.f32 %v977, %v840
        %982 = vst [vmem:[#allocation3] sm:$0xff] 0.0
        %983 = vst.msk [vmem:[#allocation3 + $0x8] sm:$0xff] %vm935, 0.0
        %984 = vst [vmem:[#allocation3 + $0x10] sm:$0xff] 0.0
        %985 = vst.msk [vmem:[#allocation3 + $0x18] sm:$0xff] %vm935, 0.0
        %986 = vst [vmem:[#allocation3 + $0x20] sm:$0x3] 0.0
        %vm987 = vcmask 123904
        %988 = vst.msk [vmem:[#allocation3 + $0x28] sm:$0x3] %vm987, 0.0
        %vm991 = vcmask 1040384
        %v992 = vrot.slane %v980, 7
        %v993 = vrot.slane %v981, 7
        %v994 = vsel %vm991, %v992, %v993
        %998 = vst [vmem:[#allocation3] sm:$0xfe] %v992
        %999 = vst [vmem:[#allocation3 + $0x10] sm:$0xff] %v994
        %1000 = vst [vmem:[#allocation3 + $0x20] sm:$0x1] %v993
        %s1001 = sld [smem:[#allocation4 + $0x1]]
        %v1002 = vld [vmem:[#allocation3] sm:$0xff]
        %v1003 = vld [vmem:[#allocation3 + $0x8] sm:$0xff]
        %v1004 = vld [vmem:[#allocation3 + $0x10] sm:$0xff]
        %v1005 = vld [vmem:[#allocation3 + $0x18] sm:$0xff]
        %v1006 = vld [vmem:[#allocation3 + $0x20] sm:$0x3]
        %v1007 = vld [vmem:[#allocation3 + $0x28] sm:$0x3]
        %v1008 = vpack.c.bf16 %v1004, %v1002
        %v1009 = vpack.c.bf16 %v1005, %v1003
        %v1010 = vpack.c.bf16 %v1006, %v1006
        %v1011 = vpack.c.bf16 %v1007, %v1007
        %v1012 = vld [vmem:[%s6] sm:$0xf]
        %v1013 = vld [vmem:[%s6 + $0x4] sm:$0xf]
        %v1014 = vld [vmem:[%s6 + $0x8] sm:$0xf]
        %v1015 = vld [vmem:[%s6 + $0xc] sm:$0xf]
        %v1016 = vld [vmem:[%s6 + $0x10] sm:$0xf]
        %v1017 = vld [vmem:[%s6 + $0x14] sm:$0xf]
        %v1018 = vld [vmem:[%s6 + $0x18] sm:$0xf]
        %v1019 = vld [vmem:[%s6 + $0x1c] sm:$0xf]
        %v1020 = vld [vmem:[%s6 + $0x20] sm:$0xf]
        %v1021 = vld [vmem:[%s6 + $0x24] sm:$0xf]
        %v1022 = vld [vmem:[%s6 + $0x28] sm:$0xf]
        %v1023 = vld [vmem:[%s6 + $0x2c] sm:$0xf]
        %v1024 = vld [vmem:[%s6 + $0x30] sm:$0xf]
        %v1025 = vld [vmem:[%s6 + $0x34] sm:$0xf]
        %v1026 = vld [vmem:[%s6 + $0x38] sm:$0xf]
        %v1027 = vld [vmem:[%s6 + $0x3c] sm:$0xf]
        %v1028 = vld [vmem:[%s7] sm:$0x1]
        %v1030 = vlaneseq
        %v1031 = vshrl.u32 %v1030, 7
        %v1032 = vsub.s32 0, %v1031
        %v1033 = vrot.slane %v1028, %v1032
        %v1036 = vshrl.u32 %v1008, 16
        %v1038 = vshll.u32 %v1008, 16
        %v1040 = vrot.slane %v1038, 1
        %v1041 = vor.u32 %v1036, %v1040
        %v1043 = vshll.u32 %v1010, 16
        %v1045 = vrot.slane %v1043, 1
        %v1046 = vsel %vm489, %v1041, %v1045
        %v1064 = vunpack.c.l.b16 %v1012
        %v1065 = vunpack.c.l.b16 %v1013
        %v1066 = vunpack.c.l.b16 %v1014
        %v1067 = vunpack.c.l.b16 %v1015
        %v1068 = vunpack.c.l.b16 %v1016
        %v1069 = vunpack.c.l.b16 %v1017
        %v1070 = vunpack.c.l.b16 %v1018
        %v1071 = vunpack.c.l.b16 %v1019
        %v1072 = vunpack.c.l.b16 %v1020
        %v1073 = vunpack.c.l.b16 %v1021
        %v1074 = vunpack.c.l.b16 %v1022
        %v1075 = vunpack.c.l.b16 %v1023
        %v1076 = vunpack.c.l.b16 %v1024
        %v1077 = vunpack.c.l.b16 %v1025
        %v1078 = vunpack.c.l.b16 %v1026
        %v1079 = vunpack.c.l.b16 %v1027
        %v1080 = vpack.c.b16 %v1065, %v1064
        %v1081 = vpack.c.b16 %v1067, %v1066
        %v1082 = vpack.c.b16 %v1069, %v1068
        %v1083 = vpack.c.b16 %v1071, %v1070
        %v1084 = vpack.c.b16 %v1073, %v1072
        %v1085 = vpack.c.b16 %v1075, %v1074
        %v1086 = vpack.c.b16 %v1077, %v1076
        %v1087 = vpack.c.b16 %v1079, %v1078
        %1096 = vmatprep.subr.bf16.mxu0 0
        %1097 = vmatpush1.bf16.msra.mxu0 %v1080
        %1098 = vmatprep.subr.bf16.mxu0 0
        %1099 = vmatpush1.bf16.msra.mxu0 %v1081
        %1100 = vmatprep.subr.bf16.mxu0 0
        %1101 = vmatpush1.bf16.msra.mxu0 %v1082
        %1102 = vmatprep.subr.bf16.mxu0 0
        %1103 = vmatpush1.bf16.msra.mxu0 %v1083
        %1104 = vmatprep.subr.bf16.mxu0 0
        %1105 = vmatpush1.bf16.msra.mxu0 %v1084
        %1106 = vmatprep.subr.bf16.mxu0 0
        %1107 = vmatpush1.bf16.msra.mxu0 %v1085
        %1108 = vmatprep.subr.bf16.mxu0 0
        %1109 = vmatpush1.bf16.msra.mxu0 %v1086
        %1110 = vmatprep.subr.bf16.mxu0 0
        %1111 = vmatpush1.bf16.msra.mxu0 %v1087
        %1112 = vmatprep.subr.bf16.mxu0 0
        %1113 = vmatpush1.bf16.msra.mxu0 0
        %1114 = vmatprep.subr.bf16.mxu0 0
        %1115 = vmatpush1.bf16.msra.mxu0 0
        %1116 = vmatprep.subr.bf16.mxu0 0
        %1117 = vmatpush1.bf16.msra.mxu0 0
        %1118 = vmatprep.subr.bf16.mxu0 0
        %1119 = vmatpush1.bf16.msra.mxu0 0
        %1120 = vmatprep.subr.bf16.mxu0 0
        %1121 = vmatpush1.bf16.msra.mxu0 0
        %1122 = vmatprep.subr.bf16.mxu0 0
        %1123 = vmatpush1.bf16.msra.mxu0 0
        %1124 = vmatprep.subr.bf16.mxu0 0
        %1125 = vmatpush1.bf16.msra.mxu0 0
        %1126 = vmatprep.subr.bf16.mxu0 0
        %1127 = vmatpush1.bf16.msra.mxu0 0
        %1128 = vmatprep.mubr.bf16.mxu0 0
        %1129 = vmatmul.mubr.bf16.gmra.mrb[0].mxu0 %v1046
        %v1130 = vpop.f32.mrb[0].mxu0
        %v1131 = vadd.f32 %v1033, %v1130
        %v1132 = vpop.f32.mrb[0].mxu0
        %v1133 = vpop.f32.mrb[0].mxu0
        %v1134 = vadd.f32 %v1033, %v1133
        %v1135 = vpop.f32.mrb[0].mxu0
        %1136 = vdwg.mxu0
        %v1137 = vmax.f32 %v1131, 0.0
        %v1138 = vmax.f32 %v1134, 0.0
        %v1139 = vld [vmem:[%s8] sm:$0xf]
        %v1140 = vld [vmem:[%s8 + $0x4] sm:$0xf]
        %v1141 = vld [vmem:[%s8 + $0x8] sm:$0xf]
        %v1142 = vld [vmem:[%s8 + $0xc] sm:$0xf]
        %v1143 = vld [vmem:[%s8 + $0x10] sm:$0xf]
        %v1144 = vld [vmem:[%s8 + $0x14] sm:$0xf]
        %v1145 = vld [vmem:[%s8 + $0x18] sm:$0xf]
        %v1146 = vld [vmem:[%s8 + $0x1c] sm:$0xf]
        %v1147 = vld [vmem:[%s8 + $0x20] sm:$0xf]
        %v1148 = vld [vmem:[%s8 + $0x24] sm:$0xf]
        %v1149 = vld [vmem:[%s8 + $0x28] sm:$0xf]
        %v1150 = vld [vmem:[%s8 + $0x2c] sm:$0xf]
        %v1151 = vld [vmem:[%s8 + $0x30] sm:$0xf]
        %v1152 = vld [vmem:[%s8 + $0x34] sm:$0xf]
        %v1153 = vld [vmem:[%s8 + $0x38] sm:$0xf]
        %v1154 = vld [vmem:[%s8 + $0x3c] sm:$0xf]
        %v1155 = vld [vmem:[%s8 + $0x40] sm:$0xf]
        %v1156 = vld [vmem:[%s8 + $0x44] sm:$0xf]
        %s1157 = scalar_lea.vmem %s8, 72
        %v1158 = vld [vmem:[%s1157] sm:$0xf]
        %v1159 = vld [vmem:[%s1157 + $0x4] sm:$0xf]
        %v1160 = vld [vmem:[%s1157 + $0x8] sm:$0xf]
        %v1161 = vld [vmem:[%s1157 + $0xc] sm:$0xf]
        %v1162 = vld [vmem:[%s1157 + $0x10] sm:$0xf]
        %v1163 = vld [vmem:[%s1157 + $0x14] sm:$0xf]
        %v1164 = vld [vmem:[%s1157 + $0x18] sm:$0xf]
        %v1165 = vld [vmem:[%s1157 + $0x1c] sm:$0xf]
        %v1166 = vld [vmem:[%s1157 + $0x20] sm:$0xf]
        %v1167 = vld [vmem:[%s1157 + $0x24] sm:$0xf]
        %v1168 = vld [vmem:[%s1157 + $0x28] sm:$0xf]
        %v1169 = vld [vmem:[%s1157 + $0x2c] sm:$0xf]
        %v1170 = vld [vmem:[%s1157 + $0x30] sm:$0xf]
        %v1171 = vld [vmem:[%s1157 + $0x34] sm:$0xf]
        %v1172 = vld [vmem:[%s1157 + $0x38] sm:$0xf]
        %v1173 = vld [vmem:[%s1157 + $0x3c] sm:$0xf]
        %v1174 = vld [vmem:[%s1157 + $0x40] sm:$0xf]
        %v1175 = vld [vmem:[%s1157 + $0x44] sm:$0xf]
        %v1177 = vshrl.u32 %v1009, 16
        %v1179 = vshll.u32 %v1009, 16
        %v1181 = vrot.slane %v1179, 1
        %v1182 = vor.u32 %v1177, %v1181
        %v1184 = vshll.u32 %v1011, 16
        %v1186 = vrot.slane %v1184, 1
        %v1187 = vsel %vm489, %v1182, %v1186
        %v1206 = vunpack.c.l.b16 %v1158
        %v1207 = vunpack.c.l.b16 %v1159
        %v1208 = vunpack.c.l.b16 %v1160
        %v1209 = vunpack.c.l.b16 %v1161
        %v1210 = vunpack.c.l.b16 %v1162
        %v1211 = vunpack.c.l.b16 %v1163
        %v1212 = vunpack.c.l.b16 %v1164
        %v1213 = vunpack.c.l.b16 %v1165
        %v1214 = vunpack.c.l.b16 %v1166
        %v1215 = vunpack.c.l.b16 %v1167
        %v1216 = vunpack.c.l.b16 %v1168
        %v1217 = vunpack.c.l.b16 %v1169
        %v1218 = vunpack.c.l.b16 %v1170
        %v1219 = vunpack.c.l.b16 %v1171
        %v1220 = vunpack.c.l.b16 %v1172
        %v1221 = vunpack.c.l.b16 %v1173
        %v1222 = vunpack.c.l.b16 %v1174
        %v1223 = vunpack.c.l.b16 %v1175
        %v1224 = vpack.c.b16 %v1207, %v1206
        %v1225 = vpack.c.b16 %v1209, %v1208
        %v1226 = vpack.c.b16 %v1211, %v1210
        %v1227 = vpack.c.b16 %v1213, %v1212
        %v1228 = vpack.c.b16 %v1215, %v1214
        %v1229 = vpack.c.b16 %v1217, %v1216
        %v1230 = vpack.c.b16 %v1219, %v1218
        %v1231 = vpack.c.b16 %v1221, %v1220
        %v1232 = vpack.c.b16 %v1223, %v1222
        %v1243 = vsel %vm935, %v1187, 0
        %1245 = vmatprep.subr.bf16.mxu0 0
        %1246 = vmatpush1.bf16.msra.mxu0 %v1224
        %1247 = vmatprep.subr.bf16.mxu0 0
        %1248 = vmatpush1.bf16.msra.mxu0 %v1225
        %1249 = vmatprep.subr.bf16.mxu0 0
        %1250 = vmatpush1.bf16.msra.mxu0 %v1226
        %1251 = vmatprep.subr.bf16.mxu0 0
        %1252 = vmatpush1.bf16.msra.mxu0 %v1227
        %1253 = vmatprep.subr.bf16.mxu0 0
        %1254 = vmatpush1.bf16.msra.mxu0 %v1228
        %1255 = vmatprep.subr.bf16.mxu0 0
        %1256 = vmatpush1.bf16.msra.mxu0 %v1229
        %1257 = vmatprep.subr.bf16.mxu0 0
        %1258 = vmatpush1.bf16.msra.mxu0 %v1230
        %1259 = vmatprep.subr.bf16.mxu0 0
        %1260 = vmatpush1.bf16.msra.mxu0 %v1231
        %1261 = vmatprep.subr.bf16.mxu0 0
        %1262 = vmatpush1.bf16.msra.mxu0 %v1232
        %1263 = vmatprep.subr.bf16.mxu0 0
        %1264 = vmatpush1.bf16.msra.mxu0 0
        %1265 = vmatprep.subr.bf16.mxu0 0
        %1266 = vmatpush1.bf16.msra.mxu0 0
        %1267 = vmatprep.subr.bf16.mxu0 0
        %1268 = vmatpush1.bf16.msra.mxu0 0
        %1269 = vmatprep.subr.bf16.mxu0 0
        %1270 = vmatpush1.bf16.msra.mxu0 0
        %1271 = vmatprep.subr.bf16.mxu0 0
        %1272 = vmatpush1.bf16.msra.mxu0 0
        %1273 = vmatprep.subr.bf16.mxu0 0
        %1274 = vmatpush1.bf16.msra.mxu0 0
        %1275 = vmatprep.subr.bf16.mxu0 0
        %1276 = vmatpush1.bf16.msra.mxu0 0
        %1277 = vmatprep.mubr.bf16.mxu0 %v1243
        %1278 = vmatmul.mubr.bf16.gmra.mrb[0].mxu0 %v1046
        %v1279 = vpop.f32.mrb[0].mxu0
        %v1280 = vadd.f32 0.0, %v1279
        %v1281 = vpop.f32.mrb[0].mxu0
        %v1282 = vpop.f32.mrb[0].mxu0
        %v1283 = vadd.f32 0.0, %v1282
        %v1284 = vpop.f32.mrb[0].mxu0
        %1285 = vdwg.mxu0
        %v1304 = vunpack.c.l.b16 %v1139
        %v1305 = vunpack.c.l.b16 %v1140
        %v1306 = vunpack.c.l.b16 %v1141
        %v1307 = vunpack.c.l.b16 %v1142
        %v1308 = vunpack.c.l.b16 %v1143
        %v1309 = vunpack.c.l.b16 %v1144
        %v1310 = vunpack.c.l.b16 %v1145
        %v1311 = vunpack.c.l.b16 %v1146
        %v1312 = vunpack.c.l.b16 %v1147
        %v1313 = vunpack.c.l.b16 %v1148
        %v1314 = vunpack.c.l.b16 %v1149
        %v1315 = vunpack.c.l.b16 %v1150
        %v1316 = vunpack.c.l.b16 %v1151
        %v1317 = vunpack.c.l.b16 %v1152
        %v1318 = vunpack.c.l.b16 %v1153
        %v1319 = vunpack.c.l.b16 %v1154
        %v1320 = vunpack.c.l.b16 %v1155
        %v1321 = vunpack.c.l.b16 %v1156
        %v1322 = vpack.c.b16 %v1305, %v1304
        %v1323 = vpack.c.b16 %v1307, %v1306
        %v1324 = vpack.c.b16 %v1309, %v1308
        %v1325 = vpack.c.b16 %v1311, %v1310
        %v1326 = vpack.c.b16 %v1313, %v1312
        %v1327 = vpack.c.b16 %v1315, %v1314
        %v1328 = vpack.c.b16 %v1317, %v1316
        %v1329 = vpack.c.b16 %v1319, %v1318
        %v1330 = vpack.c.b16 %v1321, %v1320
        %v1340 = vsel %vm935, %v1009, 0
        %1342 = vmatprep.subr.bf16.mxu0 0
        %1343 = vmatpush1.bf16.msra.mxu0 %v1322
        %1344 = vmatprep.subr.bf16.mxu0 0
        %1345 = vmatpush1.bf16.msra.mxu0 %v1323
        %1346 = vmatprep.subr.bf16.mxu0 0
        %1347 = vmatpush1.bf16.msra.mxu0 %v1324
        %1348 = vmatprep.subr.bf16.mxu0 0
        %1349 = vmatpush1.bf16.msra.mxu0 %v1325
        %1350 = vmatprep.subr.bf16.mxu0 0
        %1351 = vmatpush1.bf16.msra.mxu0 %v1326
        %1352 = vmatprep.subr.bf16.mxu0 0
        %1353 = vmatpush1.bf16.msra.mxu0 %v1327
        %1354 = vmatprep.subr.bf16.mxu0 0
        %1355 = vmatpush1.bf16.msra.mxu0 %v1328
        %1356 = vmatprep.subr.bf16.mxu0 0
        %1357 = vmatpush1.bf16.msra.mxu0 %v1329
        %1358 = vmatprep.subr.bf16.mxu0 0
        %1359 = vmatpush1.bf16.msra.mxu0 %v1330
        %1360 = vmatprep.subr.bf16.mxu0 0
        %1361 = vmatpush1.bf16.msra.mxu0 0
        %1362 = vmatprep.subr.bf16.mxu0 0
        %1363 = vmatpush1.bf16.msra.mxu0 0
        %1364 = vmatprep.subr.bf16.mxu0 0
        %1365 = vmatpush1.bf16.msra.mxu0 0
        %1366 = vmatprep.subr.bf16.mxu0 0
        %1367 = vmatpush1.bf16.msra.mxu0 0
        %1368 = vmatprep.subr.bf16.mxu0 0
        %1369 = vmatpush1.bf16.msra.mxu0 0
        %1370 = vmatprep.subr.bf16.mxu0 0
        %1371 = vmatpush1.bf16.msra.mxu0 0
        %1372 = vmatprep.subr.bf16.mxu0 0
        %1373 = vmatpush1.bf16.msra.mxu0 0
        %1374 = vmatprep.mubr.bf16.mxu0 %v1340
        %1375 = vmatmul.mubr.bf16.gmra.mrb[0].mxu0 %v1008
        %v1376 = vpop.f32.mrb[0].mxu0
        %v1377 = vadd.f32 %v1280, %v1376
        %v1378 = vpop.f32.mrb[0].mxu0
        %v1379 = vpop.f32.mrb[0].mxu0
        %v1380 = vadd.f32 %v1283, %v1379
        %v1381 = vpop.f32.mrb[0].mxu0
        %1382 = vdwg.mxu0
        %s1383 = scalar_lea.vmem %s8, 144
        %v1384 = vld [vmem:[%s1383] sm:$0xf]
        %v1385 = vld [vmem:[%s1383 + $0x4] sm:$0xf]
        %v1386 = vld [vmem:[%s1383 + $0x8] sm:$0xf]
        %v1387 = vld [vmem:[%s1383 + $0xc] sm:$0xf]
        %v1388 = vld [vmem:[%s1383 + $0x10] sm:$0xf]
        %v1389 = vld [vmem:[%s1383 + $0x14] sm:$0xf]
        %v1390 = vld [vmem:[%s1383 + $0x18] sm:$0xf]
        %v1391 = vld [vmem:[%s1383 + $0x1c] sm:$0xf]
        %v1392 = vld [vmem:[%s1383 + $0x20] sm:$0xf]
        %v1393 = vld [vmem:[%s1383 + $0x24] sm:$0xf]
        %v1394 = vld [vmem:[%s1383 + $0x28] sm:$0xf]
        %v1395 = vld [vmem:[%s1383 + $0x2c] sm:$0xf]
        %v1396 = vld [vmem:[%s1383 + $0x30] sm:$0xf]
        %v1397 = vld [vmem:[%s1383 + $0x34] sm:$0xf]
        %v1398 = vld [vmem:[%s1383 + $0x38] sm:$0xf]
        %v1399 = vld [vmem:[%s1383 + $0x3c] sm:$0xf]
        %v1400 = vld [vmem:[%s1383 + $0x40] sm:$0xf]
        %v1401 = vld [vmem:[%s1383 + $0x44] sm:$0xf]
        %v1406 = vrot.slane %v1008, 1
        %v1407 = vrot.slane %v1010, 1
        %v1408 = vsel %vm750, %v1406, %v1407
        %v1409 = vrot.slane %v1009, 1
        %v1410 = vrot.slane %v1011, 1
        %v1411 = vsel %vm750, %v1409, %v1410
        %v1431 = vunpack.c.l.b16 %v1384
        %v1432 = vunpack.c.l.b16 %v1385
        %v1433 = vunpack.c.l.b16 %v1386
        %v1434 = vunpack.c.l.b16 %v1387
        %v1435 = vunpack.c.l.b16 %v1388
        %v1436 = vunpack.c.l.b16 %v1389
        %v1437 = vunpack.c.l.b16 %v1390
        %v1438 = vunpack.c.l.b16 %v1391
        %v1439 = vunpack.c.l.b16 %v1392
        %v1440 = vunpack.c.l.b16 %v1393
        %v1441 = vunpack.c.l.b16 %v1394
        %v1442 = vunpack.c.l.b16 %v1395
        %v1443 = vunpack.c.l.b16 %v1396
        %v1444 = vunpack.c.l.b16 %v1397
        %v1445 = vunpack.c.l.b16 %v1398
        %v1446 = vunpack.c.l.b16 %v1399
        %v1447 = vunpack.c.l.b16 %v1400
        %v1448 = vunpack.c.l.b16 %v1401
        %v1449 = vpack.c.b16 %v1432, %v1431
        %v1450 = vpack.c.b16 %v1434, %v1433
        %v1451 = vpack.c.b16 %v1436, %v1435
        %v1452 = vpack.c.b16 %v1438, %v1437
        %v1453 = vpack.c.b16 %v1440, %v1439
        %v1454 = vpack.c.b16 %v1442, %v1441
        %v1455 = vpack.c.b16 %v1444, %v1443
        %v1456 = vpack.c.b16 %v1446, %v1445
        %v1457 = vpack.c.b16 %v1448, %v1447
        %v1468 = vsel %vm935, %v1411, 0
        %1470 = vmatprep.subr.bf16.mxu0 0
        %1471 = vmatpush1.bf16.msra.mxu0 %v1449
        %1472 = vmatprep.subr.bf16.mxu0 0
        %1473 = vmatpush1.bf16.msra.mxu0 %v1450
        %1474 = vmatprep.subr.bf16.mxu0 0
        %1475 = vmatpush1.bf16.msra.mxu0 %v1451
        %1476 = vmatprep.subr.bf16.mxu0 0
        %1477 = vmatpush1.bf16.msra.mxu0 %v1452
        %1478 = vmatprep.subr.bf16.mxu0 0
        %1479 = vmatpush1.bf16.msra.mxu0 %v1453
        %1480 = vmatprep.subr.bf16.mxu0 0
        %1481 = vmatpush1.bf16.msra.mxu0 %v1454
        %1482 = vmatprep.subr.bf16.mxu0 0
        %1483 = vmatpush1.bf16.msra.mxu0 %v1455
        %1484 = vmatprep.subr.bf16.mxu0 0
        %1485 = vmatpush1.bf16.msra.mxu0 %v1456
        %1486 = vmatprep.subr.bf16.mxu0 0
        %1487 = vmatpush1.bf16.msra.mxu0 %v1457
        %1488 = vmatprep.subr.bf16.mxu0 0
        %1489 = vmatpush1.bf16.msra.mxu0 0
        %1490 = vmatprep.subr.bf16.mxu0 0
        %1491 = vmatpush1.bf16.msra.mxu0 0
        %1492 = vmatprep.subr.bf16.mxu0 0
        %1493 = vmatpush1.bf16.msra.mxu0 0
        %1494 = vmatprep.subr.bf16.mxu0 0
        %1495 = vmatpush1.bf16.msra.mxu0 0
        %1496 = vmatprep.subr.bf16.mxu0 0
        %1497 = vmatpush1.bf16.msra.mxu0 0
        %1498 = vmatprep.subr.bf16.mxu0 0
        %1499 = vmatpush1.bf16.msra.mxu0 0
        %1500 = vmatprep.subr.bf16.mxu0 0
        %1501 = vmatpush1.bf16.msra.mxu0 0
        %1502 = vmatprep.mubr.bf16.mxu0 %v1468
        %1503 = vmatmul.mubr.bf16.gmra.mrb[0].mxu0 %v1408
        %v1504 = vpop.f32.mrb[0].mxu0
        %v1505 = vadd.f32 0.0, %v1504
        %v1506 = vpop.f32.mrb[0].mxu0
        %v1507 = vpop.f32.mrb[0].mxu0
        %v1508 = vadd.f32 0.0, %v1507
        %v1509 = vpop.f32.mrb[0].mxu0
        %1510 = vdwg.mxu0
        %v1511 = vadd.f32 %v1377, %v1505
        %v1512 = vadd.f32 %v1380, %v1508
        %v1513 = vld [vmem:[%s9] sm:$0x1]
        %v1515 = vlaneseq
        %v1516 = vshrl.u32 %v1515, 7
        %v1517 = vsub.s32 0, %v1516
        %v1518 = vrot.slane %v1513, %v1517
        %v1520 = vadd.f32 %v1511, %v1518
        %v1521 = vadd.f32 %v1512, %v1518
        %v1522 = vmax.f32 %v1520, 0.0
        %v1523 = vmax.f32 %v1521, 0.0
        %1526 = vrot.lane.b32.xlu0 %v1137, 96
        %v1527 = vpop.permute.xlu0 %1526
        %1528 = vrot.lane.b32.xlu0 %v1138, 96
        %v1529 = vpop.permute.xlu0 %1528
        %v1532 = vmul.f32 %v1137, %v1527
        %v1533 = vmul.f32 %v1138, %v1529
        %v1534 = vpack.c.bf16 %v1533, %v1532
        %v1535 = vld [vmem:[%s10] sm:$0xf]
        %v1536 = vld [vmem:[%s10 + $0x4] sm:$0xf]
        %v1537 = vld [vmem:[%s10 + $0x8] sm:$0xf]
        %v1538 = vld [vmem:[%s10 + $0xc] sm:$0xf]
        %v1539 = vstv %s1001
        %v1544 = vunpack.c.l.b16 %v1535
        %v1545 = vunpack.c.l.b16 %v1536
        %v1546 = vunpack.c.l.b16 %v1537
        %v1547 = vunpack.c.l.b16 %v1538
        %v1548 = vpack.c.b16 %v1545, %v1544
        %v1549 = vpack.c.b16 %v1547, %v1546
        %v1553 = vsel %vm869, %v1534, 0
        %1555 = vmatprep.subr.bf16.mxu0 0
        %1556 = vmatpush1.bf16.msra.mxu0 %v1548
        %1557 = vmatprep.subr.bf16.mxu0 0
        %1558 = vmatpush1.bf16.msra.mxu0 %v1549
        %1559 = vmatprep.subr.bf16.mxu0 0
        %1560 = vmatpush1.bf16.msra.mxu0 0
        %1561 = vmatprep.subr.bf16.mxu0 0
        %1562 = vmatpush1.bf16.msra.mxu0 0
        %1563 = vmatprep.subr.bf16.mxu0 0
        %1564 = vmatpush1.bf16.msra.mxu0 0
        %1565 = vmatprep.subr.bf16.mxu0 0
        %1566 = vmatpush1.bf16.msra.mxu0 0
        %1567 = vmatprep.subr.bf16.mxu0 0
        %1568 = vmatpush1.bf16.msra.mxu0 0
        %1569 = vmatprep.subr.bf16.mxu0 0
        %1570 = vmatpush1.bf16.msra.mxu0 0
        %1571 = vmatprep.subr.bf16.mxu0 0
        %1572 = vmatpush1.bf16.msra.mxu0 0
        %1573 = vmatprep.subr.bf16.mxu0 0
        %1574 = vmatpush1.bf16.msra.mxu0 0
        %1575 = vmatprep.subr.bf16.mxu0 0
        %1576 = vmatpush1.bf16.msra.mxu0 0
        %1577 = vmatprep.subr.bf16.mxu0 0
        %1578 = vmatpush1.bf16.msra.mxu0 0
        %1579 = vmatprep.subr.bf16.mxu0 0
        %1580 = vmatpush1.bf16.msra.mxu0 0
        %1581 = vmatprep.subr.bf16.mxu0 0
        %1582 = vmatpush1.bf16.msra.mxu0 0
        %1583 = vmatprep.subr.bf16.mxu0 0
        %1584 = vmatpush1.bf16.msra.mxu0 0
        %1585 = vmatprep.subr.bf16.mxu0 0
        %1586 = vmatpush1.bf16.msra.mxu0 0
        %1587 = vmatprep.mubr.bf16.mxu0 0
        %1588 = vmatmul.mubr.bf16.gmra.mrb[0].mxu0 %v1553
        %v1589 = vpop.f32.mrb[0].mxu0
        %v1590 = vadd.f32 %v1539, %v1589
        %v1591 = vpop.f32.mrb[0].mxu0
        %v1592 = vpop.f32.mrb[0].mxu0
        %v1593 = vadd.f32 %v1539, %v1592
        %v1594 = vpop.f32.mrb[0].mxu0
        %1595 = vdwg.mxu0
        %v1596 = vmax.f32 %v1590, 0.0
        %v1597 = vmax.f32 %v1593, 0.0
        %v1598 = vsub.f32 0.0, %v1596
        %v1599 = vsub.f32 0.0, %v1597
        %v1600 = vmul.f32 %v1598, 1.442695
        %v1601 = vpow.pop %v1600
        %v1602 = vmul.f32 %v1599, 1.442695
        %v1603 = vpow.pop %v1602
        %v1604 = vadd.f32 %v1601, 1.0
        %v1605 = vadd.f32 %v1603, 1.0
        %v1606 = vrcp.pop %v1604
        %v1607 = vmul.f32 1.0, %v1606
        %v1608 = vrcp.pop %v1605
        %v1609 = vmul.f32 1.0, %v1608
        %v1610 = vpack.c.bf16 %v1609, %v1607
        %v1612 = vsel %vm935, %v1610, 0
        %1614 = vmatprep.subr.bf16.mxu0 0
        %1615 = vmatpush1.bf16.msra.mxu0 %v933
        %1616 = vmatprep.subr.bf16.mxu0 0
        %1617 = vmatpush1.bf16.msra.mxu0 0
        %1618 = vmatprep.subr.bf16.mxu0 0
        %1619 = vmatpush1.bf16.msra.mxu0 0
        %1620 = vmatprep.subr.bf16.mxu0 0
        %1621 = vmatpush1.bf16.msra.mxu0 0
        %1622 = vmatprep.subr.bf16.mxu0 0
        %1623 = vmatpush1.bf16.msra.mxu0 0
        %1624 = vmatprep.subr.bf16.mxu0 0
        %1625 = vmatpush1.bf16.msra.mxu0 0
        %1626 = vmatprep.subr.bf16.mxu0 0
        %1627 = vmatpush1.bf16.msra.mxu0 0
        %1628 = vmatprep.subr.bf16.mxu0 0
        %1629 = vmatpush1.bf16.msra.mxu0 0
        %1630 = vmatprep.subr.bf16.mxu0 0
        %1631 = vmatpush1.bf16.msra.mxu0 0
        %1632 = vmatprep.subr.bf16.mxu0 0
        %1633 = vmatpush1.bf16.msra.mxu0 0
        %1634 = vmatprep.subr.bf16.mxu0 0
        %1635 = vmatpush1.bf16.msra.mxu0 0
        %1636 = vmatprep.subr.bf16.mxu0 0
        %1637 = vmatpush1.bf16.msra.mxu0 0
        %1638 = vmatprep.subr.bf16.mxu0 0
        %1639 = vmatpush1.bf16.msra.mxu0 0
        %1640 = vmatprep.subr.bf16.mxu0 0
        %1641 = vmatpush1.bf16.msra.mxu0 0
        %1642 = vmatprep.subr.bf16.mxu0 0
        %1643 = vmatpush1.bf16.msra.mxu0 0
        %1644 = vmatprep.subr.bf16.mxu0 0
        %1645 = vmatpush1.bf16.msra.mxu0 0
        %1646 = vmatprep.mubr.bf16.mxu0 0
        %1647 = vmatmul.mubr.bf16.gmra.mrb[0].mxu0 %v1612
        %v1648 = vpop.f32.mrb[0].mxu0
        %v1649 = vadd.f32 0.0, %v1648
        %v1650 = vpop.f32.mrb[0].mxu0
        %v1651 = vpop.f32.mrb[0].mxu0
        %v1652 = vadd.f32 0.0, %v1651
        %v1653 = vpop.f32.mrb[0].mxu0
        %1654 = vdwg.mxu0
        %v1655 = vmul.f32 %v1649, %v1522
        %v1656 = vmul.f32 %v1652, %v1523
        %1657 = vst [vmem:[%s454] sm:$0xff] %v1655
        %1658 = vst [vmem:[%s454 + $0x8] sm:$0xff] %v1656
        %p1659 = scmp.lt.s32.totalorder %s25, 1
        %s1660 = scalar_select %p1659, %s25, 1
        %s1661 = smul.addr %s1660, 2
        %s1662 = smul.addr %s1661, 8
        %s1663 = scalar_lea.vmem %s13, %s1662
        // Predicated region
        $region77: #{double_conv_forward.1} parent=71 // pred_check
          %p1664 = pneg %p321
        $region78: #{double_conv_forward.1} parent=71 // pred_check_branch
          %1666 = sbr.rel (%p1664) target = $region80
        $region79: #{double_conv_forward.1} parent=71 // pred_region
          _
        $region80: #{double_conv_forward.1} parent=71 // pred_fallthru
          _
      $region72: #{double_conv_forward.1} parent=5 // pred_fallthru
        _
      %p1667 = scmp.le.s32.totalorder 2, %s20
      // Predicated region
      $region81: #{double_conv_forward.1} parent=5 // pred_check
        %p1668 = pneg %p1667
      $region82: #{double_conv_forward.1} parent=5 // pred_check_branch
        %1670 = sbr.rel (%p1668) target = $region84
      $region83: #{double_conv_forward.1} parent=5 // pred_region
        %s1671 = ssub.s32 %s20, 2
        // Predicated region
        $region85: #{double_conv_forward.1} parent=83 // pred_check
          %p1672 = pneg %p327
        $region86: #{double_conv_forward.1} parent=83 // pred_check_branch
          %1674 = sbr.rel (%p1672) target = $region88
        $region87: #{double_conv_forward.1} parent=83 // pred_region
          %p1675 = scmp.lt.s32.totalorder %s26, 1
          %s1676 = scalar_select %p1675, %s26, 1
          %s1677 = smul.addr %s1676, 2
          %s1678 = smul.addr %s1677, 8
          %s1679 = scalar_lea.vmem %s13, %s1678
        $region88: #{double_conv_forward.1} parent=83 // pred_fallthru
          _
      $region84: #{double_conv_forward.1} parent=5 // pred_fallthru
        _
    $region6: #{double_conv_forward.1} parent=1 // loop_footer
      %s24 = sadd.s32 1, %s20
    $region7: #{double_conv_forward.1} parent=1 // loop_footer_branch
      %19 = sbr.rel target = $region3
    $region8: #{double_conv_forward.1} parent=1 // loop_exit
      _
    %1680 = vsyncpa [#allocation5], 1
    %s1681 = scalar_lea.sflag [#allocation5], 1
    %1682 = vsyncpa %s1681, 1

</llo_original>
